<compile_context>
chip_gen: v7x
topology: tpu7x:2x2x1
jax: 0.10.0
libtpu: 0.0.40
codegen_flags: <defaults>
</compile_context>

<pallas_src>
import functools

import jax
import jax.numpy as jnp
from jax.experimental import pallas as pl
from jax.experimental.pallas import tpu as pltpu


def _supcon_kernel(x_row_ref, x_col_ref, lbl_row_ref, lbl_col_ref, out_ref,
                   xr_s, self_s, m_s, d_s, ps_s, pc_s, *, inv_tau, mxu_dtype):
    j = pl.program_id(1)
    nj = pl.num_programs(1)

    # ---- per-row-tile init (first column tile): normalize + reset accumulators
    @pl.when(j == 0)
    def _init():
        xr = x_row_ref[...].astype(jnp.float32)                       # (tm, D)
        ss = jnp.sum(xr * xr, axis=-1, keepdims=True)
        # F.normalize(x, eps=1e-12): x / max(||x||, 1e-12) == x * rsqrt(max(ss, 1e-24))
        xrn = xr * jax.lax.rsqrt(jnp.maximum(ss, 1e-24))
        xr_m = xrn.astype(mxu_dtype)
        xr_s[...] = xr_m
        # self-similarity ||xn_i||^2 in the MXU dtype: used to remove the
        # j == i term from the accumulators without any (N,N) iota / diag mask.
        xr_f = xr_m.astype(jnp.float32)
        self_s[...] = jnp.sum(xr_f * xr_f, axis=-1, keepdims=True)
        m_s[...] = jnp.full_like(m_s, -jnp.inf)
        d_s[...] = jnp.zeros_like(d_s)
        ps_s[...] = jnp.zeros_like(ps_s)
        pc_s[...] = jnp.zeros_like(pc_s)

    # ---- normalize the streamed column tile, similarity tile on the MXU
    xc = x_col_ref[...].astype(jnp.float32)                           # (tn, D)
    ssc = jnp.sum(xc * xc, axis=-1, keepdims=True)
    xcn = (xc * jax.lax.rsqrt(jnp.maximum(ssc, 1e-24))).astype(mxu_dtype)

    s = jax.lax.dot_general(                                          # (tm, tn)
        xr_s[...], xcn, (((1,), (1,)), ((), ())),
        preferred_element_type=jnp.float32) * inv_tau

    # ---- online (flash) log-sum-exp over column tiles
    m_prev = m_s[...]
    m_new = jnp.maximum(m_prev, jnp.max(s, axis=-1, keepdims=True))
    d_s[...] = d_s[...] * jnp.exp(m_prev - m_new) + jnp.sum(
        jnp.exp(s - m_new), axis=-1, keepdims=True)
    m_s[...] = m_new

    # ---- positive (same-label) accumulators; linear in s -> no rescaling
    pos = (lbl_row_ref[...] == lbl_col_ref[...]).astype(jnp.float32)  # (tm, tn)
    ps_s[...] += jnp.sum(pos * s, axis=-1, keepdims=True)
    pc_s[...] += jnp.sum(pos, axis=-1, keepdims=True)

    # ---- finalize at the last column tile
    @pl.when(j == nj - 1)
    def _finalize():
        self_t = self_s[...] * inv_tau                     # diagonal value of s
        m = m_s[...]
        denom = d_s[...] - jnp.exp(self_t - m)             # drop the j == i term
        lse = jnp.log(jnp.maximum(denom, 1e-30)) + m       # log sum_{j!=i} e^s
        num_pos = pc_s[...] - 1.0                          # diag always matches
        pos_term = (ps_s[...] - self_t) - num_pos * lse    # sum_pos (s - lse)
        row_loss = -pos_term / (num_pos + 1e-5)
        out_ref[...] = jnp.where(num_pos > 0.5, row_loss, 0.0)


def _pick_tiles(B, D, in_itemsize, mxu_itemsize):
    def pick(n, cands):
        for c in cands:
            if n % c == 0:
                return c
        return n  # full extent is always a legal block shape

    tm = pick(B, (512, 256, 128, 64, 32, 16, 8))   # rows: multiple of 8 sublanes
    tn = pick(B, (512, 256, 128))                  # cols: multiple of 128 lanes

    # Keep the tile working set well inside the scoped-VMEM budget (row tile is
    # double-buffered by BlockSpec, column tile is double-buffered, plus the
    # normalized-row scratch copy and the (tm,1) accumulators).
    def vmem_bytes(a, b):
        return (2 * a * D * in_itemsize + a * D * mxu_itemsize
                + 2 * b * D * in_itemsize + 6 * a * 4 + 2 * (a + b) * 4)

    budget = 24 * 1024 * 1024
    while vmem_bytes(tm, tn) > budget and tm > 8 and B % (tm // 2) == 0:
        tm //= 2
    while vmem_bytes(tm, tn) > budget and tn > 128 and B % (tn // 2) == 0:
        tn //= 2
    return tm, tn


def supcon_loss(features, labels, *, sim="cosine", tau=1.0,
                matmul_dtype=jnp.float32):
    """Pallas equivalent of SupConLossBruteForce.forward -> scalar loss."""
    # The torch module's forward always uses the dot product of L2-normalized
    # rows (cosine similarity); its `sim` attribute is never read in forward.
    del sim
    assert tau > 0, "tau must be positive"
    B, D = features.shape

    tm, tn = _pick_tiles(B, D, jnp.dtype(features.dtype).itemsize,
                         jnp.dtype(matmul_dtype).itemsize)
    grid = (B // tm, B // tn)

    lbl_row = labels.astype(jnp.int32).reshape(B, 1)
    lbl_col = labels.astype(jnp.int32).reshape(1, B)

    kernel = functools.partial(_supcon_kernel, inv_tau=1.0 / float(tau),
                               mxu_dtype=matmul_dtype)

    per_row = pl.pallas_call(
        kernel,
        out_shape=jax.ShapeDtypeStruct((B, 1), jnp.float32),
        grid_spec=pltpu.PrefetchScalarGridSpec(
            num_scalar_prefetch=0,
            grid=grid,
            in_specs=[
                pl.BlockSpec((tm, D), lambda i, j: (i, 0)),   # anchor rows
                pl.BlockSpec((tn, D), lambda i, j: (j, 0)),   # streamed columns
                pl.BlockSpec((tm, 1), lambda i, j: (i, 0)),   # labels (rows)
                pl.BlockSpec((1, tn), lambda i, j: (0, j)),   # labels (cols)
            ],
            out_specs=pl.BlockSpec((tm, 1), lambda i, j: (i, 0)),
            scratch_shapes=[
                pltpu.VMEM((tm, D), matmul_dtype),   # normalized row tile
                pltpu.VMEM((tm, 1), jnp.float32),    # self-similarity
                pltpu.VMEM((tm, 1), jnp.float32),    # running max
                pltpu.VMEM((tm, 1), jnp.float32),    # running sum-exp
                pltpu.VMEM((tm, 1), jnp.float32),    # positive s sum
                pltpu.VMEM((tm, 1), jnp.float32),    # positive count
            ]),
        compiler_params=pltpu.CompilerParams(
            dimension_semantics=("parallel", "arbitrary"),
            vmem_limit_bytes=32 * 1024 * 1024),
        cost_estimate=pl.CostEstimate(
            flops=int(2 * B * B * D + 10 * B * B),
            transcendentals=int(B * B),
            bytes_accessed=int(4 * (B * D * (1 + grid[0]) + 4 * B))),
    )(features, features, lbl_row, lbl_col)

    # Final mean over B scalars: trivial XLA reduce.
    return jnp.sum(per_row) / B


def _reference(features, labels, tau=1.0):
    """Pure-JAX reference mirroring the PyTorch double loop."""
    x = features.astype(jnp.float32)
    xn = x / jnp.maximum(jnp.linalg.norm(x, axis=-1, keepdims=True), 1e-12)
    s = (xn @ xn.T) / tau
    B = x.shape[0]
    diag = jnp.eye(B, dtype=bool)
    total = jnp.where(diag, 0.0, jnp.exp(s)).sum(-1, keepdims=True)
    pos = (labels[:, None] == labels[None, :]) & (~diag)
    log_ratio = s - jnp.log(total)
    num_pos = pos.sum(-1)
    row = -jnp.where(pos, log_ratio, 0.0).sum(-1) / (num_pos + 1e-5)
    return row.sum() / B


if __name__ == "__main__":
    key = jax.random.PRNGKey(0)

    # Case 1: multi-tile grid (3x3) -> exercises flash accumulation + parallel rows
    B1, D1, C1 = 384, 64, 8
    k1, k2, key = jax.random.split(key, 3)
    feats1 = jax.random.normal(k1, (B1, D1), dtype=jnp.float32)
    lbls1 = jax.random.randint(k2, (B1,), 0, C1, dtype=jnp.int32)
    loss1 = supcon_loss(feats1, lbls1, tau=1.0)
    jax.block_until_ready(loss1)
    ref1 = _reference(feats1, lbls1, tau=1.0)
    assert jnp.allclose(loss1, ref1, atol=1e-4, rtol=1e-4), (loss1, ref1)

    # Case 2: small single-tile fallback, non-unit temperature
    B2, D2, C2 = 8, 32, 3
    k3, k4, key = jax.random.split(key, 3)
    feats2 = jax.random.normal(k3, (B2, D2), dtype=jnp.float32)
    lbls2 = jax.random.randint(k4, (B2,), 0, C2, dtype=jnp.int32)
    loss2 = supcon_loss(feats2, lbls2, tau=0.5)
    jax.block_until_ready(loss2)
    ref2 = _reference(feats2, lbls2, tau=0.5)
    assert jnp.allclose(loss2, ref2, atol=1e-4, rtol=1e-4), (loss2, ref2)

    # Case 3: bf16 MXU operands (v6e/v7x fast path), f32 normalize/LSE kept
    loss3 = supcon_loss(feats1, lbls1, tau=1.0, matmul_dtype=jnp.bfloat16)
    jax.block_until_ready(loss3)
    assert jnp.allclose(loss3, ref1, atol=2e-2, rtol=2e-2), (loss3, ref1)

    print("KERNEL_OK")
</pallas_src>

<mosaic_0001>
module attributes {stable_mosaic.version = 11 : i64} {
  func.func @_supcon_kernel(%arg0: i32, %arg1: i32, %arg2: memref<128x64xf32, #tpu.memory_space<vmem>>, %arg3: memref<128x64xf32, #tpu.memory_space<vmem>>, %arg4: memref<128x1xi32, #tpu.memory_space<vmem>>, %arg5: memref<1x128xi32, #tpu.memory_space<vmem>>, %arg6: memref<128x1xf32, #tpu.memory_space<vmem>>, %arg7: memref<128x64xf32, #tpu.memory_space<vmem>>, %arg8: memref<128x1xf32, #tpu.memory_space<vmem>>, %arg9: memref<128x1xf32, #tpu.memory_space<vmem>>, %arg10: memref<128x1xf32, #tpu.memory_space<vmem>>, %arg11: memref<128x1xf32, #tpu.memory_space<vmem>>, %arg12: memref<128x1xf32, #tpu.memory_space<vmem>>) attributes {dimension_semantics = [#tpu.dimension_semantics<parallel>, #tpu.dimension_semantics<arbitrary>], iteration_bounds = array<i64: 3, 3>, scalar_prefetch = 0 : i64, scratch_operands = 6 : i64, tpu.core_type = #tpu.core_type<tc>, window_params = [{transform_indices = @transform_0, window_bounds = array<i64: 128, 64>}, {transform_indices = @transform_1, window_bounds = array<i64: 128, 64>}, {transform_indices = @transform_2, window_bounds = array<i64: 128, 1>}, {transform_indices = @transform_3, window_bounds = array<i64: 1, 128>}, {transform_indices = @transform_4, window_bounds = array<i64: 128, 1>}]} {
    %c0_i32 = arith.constant 0 : i32
    %0 = arith.cmpi eq, %arg1, %c0_i32 : i32
    %1 = arith.extui %0 : i1 to i32
    %c0_i32_0 = arith.constant 0 : i32
    %2 = arith.cmpi ne, %1, %c0_i32_0 : i32
    scf.if %2 {
      %c0_32 = arith.constant 0 : index
      %c0_33 = arith.constant 0 : index
      %53 = vector.load %arg2[%c0_32, %c0_33] : memref<128x64xf32, #tpu.memory_space<vmem>>, vector<128x64xf32>
      %54 = arith.mulf %53, %53 : vector<128x64xf32>
      %cst_34 = arith.constant dense<0.000000e+00> : vector<128xf32>
      %55 = vector.multi_reduction <add>, %54, %cst_34 [1] : vector<128x64xf32> to vector<128xf32>
      %56 = vector.shape_cast %55 : vector<128xf32> to vector<128x1xf32>
      %cst_35 = arith.constant 1.000000e-24 : f32
      %57 = vector.broadcast %cst_35 : f32 to vector<128x1xf32>
      %58 = arith.maximumf %56, %57 : vector<128x1xf32>
      %59 = math.rsqrt %58 : vector<128x1xf32>
      %60 = vector.broadcast %59 : vector<128x1xf32> to vector<128x64xf32>
      %61 = arith.mulf %53, %60 : vector<128x64xf32>
      %c0_36 = arith.constant 0 : index
      %c0_37 = arith.constant 0 : index
      %62 = vector.load %arg7[%c0_36, %c0_37] : memref<128x64xf32, #tpu.memory_space<vmem>>, vector<128x64xf32>
      tpu.vector_store %arg7[%c0_36, %c0_37], %61 {strides = array<i32>} : memref<128x64xf32, #tpu.memory_space<vmem>>, vector<128x64xf32>,
      %63 = arith.mulf %61, %61 : vector<128x64xf32>
      %cst_38 = arith.constant dense<0.000000e+00> : vector<128xf32>
      %64 = vector.multi_reduction <add>, %63, %cst_38 [1] : vector<128x64xf32> to vector<128xf32>
      %65 = vector.shape_cast %64 : vector<128xf32> to vector<128x1xf32>
      %c0_39 = arith.constant 0 : index
      %c0_40 = arith.constant 0 : index
      %66 = vector.load %arg8[%c0_39, %c0_40] : memref<128x1xf32, #tpu.memory_space<vmem>>, vector<128x1xf32>
      tpu.vector_store %arg8[%c0_39, %c0_40], %65 {strides = array<i32>} : memref<128x1xf32, #tpu.memory_space<vmem>>, vector<128x1xf32>,
      %cst_41 = arith.constant 0xFF800000 : f32
      %67 = vector.broadcast %cst_41 : f32 to vector<128x1xf32>
      %c0_42 = arith.constant 0 : index
      %c0_43 = arith.constant 0 : index
      %68 = vector.load %arg9[%c0_42, %c0_43] : memref<128x1xf32, #tpu.memory_space<vmem>>, vector<128x1xf32>
      tpu.vector_store %arg9[%c0_42, %c0_43], %67 {strides = array<i32>} : memref<128x1xf32, #tpu.memory_space<vmem>>, vector<128x1xf32>,
      %cst_44 = arith.constant 0.000000e+00 : f32
      %69 = vector.broadcast %cst_44 : f32 to vector<128x1xf32>
      %c0_45 = arith.constant 0 : index
      %c0_46 = arith.constant 0 : index
      %70 = vector.load %arg10[%c0_45, %c0_46] : memref<128x1xf32, #tpu.memory_space<vmem>>, vector<128x1xf32>
      tpu.vector_store %arg10[%c0_45, %c0_46], %69 {strides = array<i32>} : memref<128x1xf32, #tpu.memory_space<vmem>>, vector<128x1xf32>,
      %cst_47 = arith.constant 0.000000e+00 : f32
      %71 = vector.broadcast %cst_47 : f32 to vector<128x1xf32>
      %c0_48 = arith.constant 0 : index
      %c0_49 = arith.constant 0 : index
      %72 = vector.load %arg11[%c0_48, %c0_49] : memref<128x1xf32, #tpu.memory_space<vmem>>, vector<128x1xf32>
      tpu.vector_store %arg11[%c0_48, %c0_49], %71 {strides = array<i32>} : memref<128x1xf32, #tpu.memory_space<vmem>>, vector<128x1xf32>,
      %cst_50 = arith.constant 0.000000e+00 : f32
      %73 = vector.broadcast %cst_50 : f32 to vector<128x1xf32>
      %c0_51 = arith.constant 0 : index
      %c0_52 = arith.constant 0 : index
      %74 = vector.load %arg12[%c0_51, %c0_52] : memref<128x1xf32, #tpu.memory_space<vmem>>, vector<128x1xf32>
      tpu.vector_store %arg12[%c0_51, %c0_52], %73 {strides = array<i32>} : memref<128x1xf32, #tpu.memory_space<vmem>>, vector<128x1xf32>,
    } else {
    }
    %c0 = arith.constant 0 : index
    %c0_1 = arith.constant 0 : index
    %3 = vector.load %arg3[%c0, %c0_1] : memref<128x64xf32, #tpu.memory_space<vmem>>, vector<128x64xf32>
    %4 = arith.mulf %3, %3 : vector<128x64xf32>
    %cst = arith.constant dense<0.000000e+00> : vector<128xf32>
    %5 = vector.multi_reduction <add>, %4, %cst [1] : vector<128x64xf32> to vector<128xf32>
    %6 = vector.shape_cast %5 : vector<128xf32> to vector<128x1xf32>
    %cst_2 = arith.constant 1.000000e-24 : f32
    %7 = vector.broadcast %cst_2 : f32 to vector<128x1xf32>
    %8 = arith.maximumf %6, %7 : vector<128x1xf32>
    %9 = math.rsqrt %8 : vector<128x1xf32>
    %10 = vector.broadcast %9 : vector<128x1xf32> to vector<128x64xf32>
    %11 = arith.mulf %3, %10 : vector<128x64xf32>
    %c0_3 = arith.constant 0 : index
    %c0_4 = arith.constant 0 : index
    %12 = vector.load %arg7[%c0_3, %c0_4] : memref<128x64xf32, #tpu.memory_space<vmem>>, vector<128x64xf32>
    %cst_5 = arith.constant dense<0.000000e+00> : vector<128x128xf32>
    %13 = tpu.matmul %12, %11, %cst_5 {dimension_numbers = #tpu.dot_dimension_numbers<[1], [1], [0], [0], [0, 0, 1, 0], [], []>} : vector<128x64xf32>, vector<128x64xf32>, vector<128x128xf32> -> vector<128x128xf32>
    %cst_6 = arith.constant 1.000000e+00 : f32
    %14 = vector.broadcast %cst_6 : f32 to vector<128x128xf32>
    %15 = arith.mulf %13, %14 : vector<128x128xf32>
    %c0_7 = arith.constant 0 : index
    %c0_8 = arith.constant 0 : index
    %16 = vector.load %arg9[%c0_7, %c0_8] : memref<128x1xf32, #tpu.memory_space<vmem>>, vector<128x1xf32>
    %cst_9 = arith.constant dense<0xFF800000> : vector<128xf32>
    %17 = vector.multi_reduction <maximumf>, %15, %cst_9 [1] : vector<128x128xf32> to vector<128xf32>
    %18 = vector.shape_cast %17 : vector<128xf32> to vector<128x1xf32>
    %19 = arith.maximumf %16, %18 : vector<128x1xf32>
    %c0_10 = arith.constant 0 : index
    %c0_11 = arith.constant 0 : index
    %20 = vector.load %arg10[%c0_10, %c0_11] : memref<128x1xf32, #tpu.memory_space<vmem>>, vector<128x1xf32>
    %21 = arith.subf %16, %19 : vector<128x1xf32>
    %22 = math.exp %21 : vector<128x1xf32>
    %23 = arith.mulf %20, %22 : vector<128x1xf32>
    %24 = vector.broadcast %19 : vector<128x1xf32> to vector<128x128xf32>
    %25 = arith.subf %15, %24 : vector<128x128xf32>
    %26 = math.exp %25 : vector<128x128xf32>
    %cst_12 = arith.constant dense<0.000000e+00> : vector<128xf32>
    %27 = vector.multi_reduction <add>, %26, %cst_12 [1] : vector<128x128xf32> to vector<128xf32>
    %28 = vector.shape_cast %27 : vector<128xf32> to vector<128x1xf32>
    %29 = arith.addf %23, %28 : vector<128x1xf32>
    %c0_13 = arith.constant 0 : index
    %c0_14 = arith.constant 0 : index
    %30 = vector.load %arg10[%c0_13, %c0_14] : memref<128x1xf32, #tpu.memory_space<vmem>>, vector<128x1xf32>
    tpu.vector_store %arg10[%c0_13, %c0_14], %29 {strides = array<i32>} : memref<128x1xf32, #tpu.memory_space<vmem>>, vector<128x1xf32>,
    %c0_15 = arith.constant 0 : index
    %c0_16 = arith.constant 0 : index
    %31 = vector.load %arg9[%c0_15, %c0_16] : memref<128x1xf32, #tpu.memory_space<vmem>>, vector<128x1xf32>
    tpu.vector_store %arg9[%c0_15, %c0_16], %19 {strides = array<i32>} : memref<128x1xf32, #tpu.memory_space<vmem>>, vector<128x1xf32>,
    %c0_17 = arith.constant 0 : index
    %c0_18 = arith.constant 0 : index
    %32 = vector.load %arg4[%c0_17, %c0_18] : memref<128x1xi32, #tpu.memory_space<vmem>>, vector<128x1xi32>
    %c0_19 = arith.constant 0 : index
    %c0_20 = arith.constant 0 : index
    %33 = vector.load %arg5[%c0_19, %c0_20] : memref<1x128xi32, #tpu.memory_space<vmem>>, vector<1x128xi32>
    %34 = vector.broadcast %32 : vector<128x1xi32> to vector<128x128xi32>
    %35 = vector.broadcast %33 : vector<1x128xi32> to vector<128x128xi32>
    %36 = arith.cmpi eq, %34, %35 : vector<128x128xi32>
    %37 = arith.extui %36 : vector<128x128xi1> to vector<128x128xi32>
    %38 = arith.sitofp %37 : vector<128x128xi32> to vector<128x128xf32>
    %c0_21 = arith.constant 0 : index
    %c0_22 = arith.constant 0 : index
    %39 = vector.load %arg11[%c0_21, %c0_22] : memref<128x1xf32, #tpu.memory_space<vmem>>, vector<128x1xf32>
    %40 = arith.mulf %38, %15 : vector<128x128xf32>
    %cst_23 = arith.constant dense<0.000000e+00> : vector<128xf32>
    %41 = vector.multi_reduction <add>, %40, %cst_23 [1] : vector<128x128xf32> to vector<128xf32>
    %42 = vector.shape_cast %41 : vector<128xf32> to vector<128x1xf32>
    %43 = arith.addf %39, %42 : vector<128x1xf32>
    %c0_24 = arith.constant 0 : index
    %c0_25 = arith.constant 0 : index
    %44 = vector.load %arg11[%c0_24, %c0_25] : memref<128x1xf32, #tpu.memory_space<vmem>>, vector<128x1xf32>
    tpu.vector_store %arg11[%c0_24, %c0_25], %43 {strides = array<i32>} : memref<128x1xf32, #tpu.memory_space<vmem>>, vector<128x1xf32>,
    %c0_26 = arith.constant 0 : index
    %c0_27 = arith.constant 0 : index
    %45 = vector.load %arg12[%c0_26, %c0_27] : memref<128x1xf32, #tpu.memory_space<vmem>>, vector<128x1xf32>
    %cst_28 = arith.constant dense<0.000000e+00> : vector<128xf32>
    %46 = vector.multi_reduction <add>, %38, %cst_28 [1] : vector<128x128xf32> to vector<128xf32>
    %47 = vector.shape_cast %46 : vector<128xf32> to vector<128x1xf32>
    %48 = arith.addf %45, %47 : vector<128x1xf32>
    %c0_29 = arith.constant 0 : index
    %c0_30 = arith.constant 0 : index
    %49 = vector.load %arg12[%c0_29, %c0_30] : memref<128x1xf32, #tpu.memory_space<vmem>>, vector<128x1xf32>
    tpu.vector_store %arg12[%c0_29, %c0_30], %48 {strides = array<i32>} : memref<128x1xf32, #tpu.memory_space<vmem>>, vector<128x1xf32>,
    %c2_i32 = arith.constant 2 : i32
    %50 = arith.cmpi eq, %arg1, %c2_i32 : i32
    %51 = arith.extui %50 : i1 to i32
    %c0_i32_31 = arith.constant 0 : i32
    %52 = arith.cmpi ne, %51, %c0_i32_31 : i32
    scf.if %52 {
      %c0_32 = arith.constant 0 : index
      %c0_33 = arith.constant 0 : index
      %53 = vector.load %arg8[%c0_32, %c0_33] : memref<128x1xf32, #tpu.memory_space<vmem>>, vector<128x1xf32>
      %cst_34 = arith.constant 1.000000e+00 : f32
      %54 = vector.broadcast %cst_34 : f32 to vector<128x1xf32>
      %55 = arith.mulf %53, %54 : vector<128x1xf32>
      %c0_35 = arith.constant 0 : index
      %c0_36 = arith.constant 0 : index
      %56 = vector.load %arg9[%c0_35, %c0_36] : memref<128x1xf32, #tpu.memory_space<vmem>>, vector<128x1xf32>
      %c0_37 = arith.constant 0 : index
      %c0_38 = arith.constant 0 : index
      %57 = vector.load %arg10[%c0_37, %c0_38] : memref<128x1xf32, #tpu.memory_space<vmem>>, vector<128x1xf32>
      %58 = arith.subf %55, %56 : vector<128x1xf32>
      %59 = math.exp %58 : vector<128x1xf32>
      %60 = arith.subf %57, %59 : vector<128x1xf32>
      %cst_39 = arith.constant 1.000000e-30 : f32
      %61 = vector.broadcast %cst_39 : f32 to vector<128x1xf32>
      %62 = arith.maximumf %60, %61 : vector<128x1xf32>
      %63 = math.log %62 : vector<128x1xf32>
      %64 = arith.addf %63, %56 : vector<128x1xf32>
      %c0_40 = arith.constant 0 : index
      %c0_41 = arith.constant 0 : index
      %65 = vector.load %arg12[%c0_40, %c0_41] : memref<128x1xf32, #tpu.memory_space<vmem>>, vector<128x1xf32>
      %cst_42 = arith.constant 1.000000e+00 : f32
      %66 = vector.broadcast %cst_42 : f32 to vector<128x1xf32>
      %67 = arith.subf %65, %66 : vector<128x1xf32>
      %c0_43 = arith.constant 0 : index
      %c0_44 = arith.constant 0 : index
      %68 = vector.load %arg11[%c0_43, %c0_44] : memref<128x1xf32, #tpu.memory_space<vmem>>, vector<128x1xf32>
      %69 = arith.subf %68, %55 : vector<128x1xf32>
      %70 = arith.mulf %67, %64 : vector<128x1xf32>
      %71 = arith.subf %69, %70 : vector<128x1xf32>
      %cst_45 = arith.constant 0.000000e+00 : f32
      %72 = vector.broadcast %cst_45 : f32 to vector<128x1xf32>
      %73 = arith.subf %72, %71 : vector<128x1xf32>
      %cst_46 = arith.constant 9.99999974E-6 : f32
      %74 = vector.broadcast %cst_46 : f32 to vector<128x1xf32>
      %75 = arith.addf %67, %74 : vector<128x1xf32>
      %76 = arith.divf %73, %75 : vector<128x1xf32>
      %cst_47 = arith.constant 5.000000e-01 : f32
      %77 = vector.broadcast %cst_47 : f32 to vector<128x1xf32>
      %78 = arith.cmpf ogt, %67, %77 : vector<128x1xf32>
      %cst_48 = arith.constant 0.000000e+00 : f32
      %79 = vector.broadcast %cst_48 : f32 to vector<128x1xf32>
      %80 = arith.select %78, %76, %79 : vector<128x1xi1>, vector<128x1xf32>
      %c0_49 = arith.constant 0 : index
      %c0_50 = arith.constant 0 : index
      %81 = vector.load %arg6[%c0_49, %c0_50] : memref<128x1xf32, #tpu.memory_space<vmem>>, vector<128x1xf32>
      tpu.vector_store %arg6[%c0_49, %c0_50], %80 {strides = array<i32>} : memref<128x1xf32, #tpu.memory_space<vmem>>, vector<128x1xf32>,
    } else {
    }
    return
  }
  func.func @transform_0(%arg0: i32, %arg1: i32) -> (i32, i32) {
    %c0_i32 = arith.constant 0 : i32
    %c0_i32_0 = arith.constant 0 : i32
    return %arg0, %c0_i32 : i32, i32
  }
  func.func @transform_1(%arg0: i32, %arg1: i32) -> (i32, i32) {
    %c0_i32 = arith.constant 0 : i32
    %c0_i32_0 = arith.constant 0 : i32
    return %arg1, %c0_i32 : i32, i32
  }
  func.func @transform_2(%arg0: i32, %arg1: i32) -> (i32, i32) {
    %c0_i32 = arith.constant 0 : i32
    %c0_i32_0 = arith.constant 0 : i32
    return %arg0, %c0_i32 : i32, i32
  }
  func.func @transform_3(%arg0: i32, %arg1: i32) -> (i32, i32) {
    %c0_i32 = arith.constant 0 : i32
    %c0_i32_0 = arith.constant 0 : i32
    return %c0_i32, %arg1 : i32, i32
  }
  func.func @transform_4(%arg0: i32, %arg1: i32) -> (i32, i32) {
    %c0_i32 = arith.constant 0 : i32
    %c0_i32_0 = arith.constant 0 : i32
    return %arg0, %c0_i32 : i32, i32
  }
}

</mosaic_0001>

<llo_original>
// kernel: tpu_custom_call.1
$region0: #{tpu_custom_call.1}
  #allocation0 [shape = 'u32[]', space=smem, size = 0x4, offset = 0x4, fixed_abs, tag = 'smem constant byte address 0x4 - core index']
  #allocation1 [shape = 'u32[144,128]{1,0:T(1,128)}', space=vmem, size = 0x12000, scoped, tag = 'internal scratch']
  #allocation2 [shape = 'f32[128,64]{1,0:T(8,128)}', space=vmem, size = 0x10000, scoped, tag = 'scratch operand']
  #allocation3 [shape = 'f32[128,1]{1,0:T(8,128)}', space=vmem, size = 0x10000, scoped, tag = 'scratch operand']
  #allocation4 [shape = 'f32[128,1]{1,0:T(8,128)}', space=vmem, size = 0x10000, scoped, tag = 'scratch operand']
  #allocation5 [shape = 'f32[128,1]{1,0:T(8,128)}', space=vmem, size = 0x10000, scoped, tag = 'scratch operand']
  #allocation6 [shape = 'f32[128,1]{1,0:T(8,128)}', space=vmem, size = 0x10000, scoped, tag = 'scratch operand']
  #allocation7 [shape = 'f32[128,1]{1,0:T(8,128)}', space=vmem, size = 0x10000, scoped, tag = 'scratch operand']
  %s0 = inlined_call_operand.vmem [shape: f32[384,64], index: 0, kind: input, shape index: {}]
  %s1 = inlined_call_operand.vmem [shape: f32[384,64], index: 1, kind: input, shape index: {}]
  %s2 = inlined_call_operand.vmem [shape: s32[384,1], index: 2, kind: input, shape index: {}]
  %s3 = inlined_call_operand.vmem [shape: s32[1,384], index: 3, kind: input, shape index: {}]
  %s4 = inlined_call_operand.vmem [shape: f32[384,1], index: 4, kind: output, shape index: {}]
  %s5 = sld [smem:[#allocation0]]
  $region57: #{tpu_custom_call.1} parent=0
    _
  %s7 = ssub.s32 1, %s5
  %s8 = scalar_select 0, %s7, %s5
  loop: start=0, step=1, limit=11
  $region2: #{tpu_custom_call.1} parent=0 // loop_pre_header
    _
  $region3: #{tpu_custom_call.1} parent=0 // loop_header
    %s10 = sphi 0, %s14
    %p11 = scmp.ge.s32.totalorder %s10, 11
    %s17 = sphi 0, %s29
    %s18 = sphi 0, %s25
    %s19 = sphi 0, %s17
    %s20 = sphi 0, %s18
    %s21 = sphi 0, %s19
    %s22 = sphi 0, %s20
    %s32 = sphi 0, %s34
    %s35 = sphi 0, %s32
    %s36 = sphi 0, %s35
    %s52 = sphi 0, %s36
    %s58 = sphi 0, %s60
    %s61 = sphi 0, %s58
    %s62 = sphi 0, %s61
    %s78 = sphi 0, %s62
    %s84 = sphi 0, %s86
    %s87 = sphi 0, %s84
    %s88 = sphi 0, %s87
    %s104 = sphi 0, %s88
    %s110 = sphi 0, %s112
    %s113 = sphi 0, %s110
    %s114 = sphi 0, %s113
    %s130 = sphi 0, %s114
    %s136 = sphi 0, %s138
    %s139 = sphi 0, %s136
    %s140 = sphi 0, %s139
    %s156 = sphi 0, %s140
  $region4: #{tpu_custom_call.1} parent=0 // loop_header_branch
    %13 = sbr.rel (%p11) target = $region8
  $region5: #{tpu_custom_call.1} parent=0 // loop_body
    %s15 = ssub.s32 %s10, 1
    %s16 = ssub.s32 %s10, 2
    %s23 = sadd.s32 1, %s18
    %p24 = scmp.ge.s32.totalorder %s23, 3
    %s25 = scalar_select %p24, 0, %s23
    %s26 = sadd.s32 1, %s17
    %s27 = scalar_select %p24, %s26, %s17
    %p28 = scmp.ge.s32.totalorder %s27, 3
    %s29 = scalar_select %p28, 0, %s27
    %s30 = ssub.s32 %s17, %s29
    %p31 = scmp.eq.s32.totalorder %s30, 0
    %s33 = sadd.s32 %s32, 1
    %s34 = scalar_select %p31, %s32, %s33
    %p37 = pneg %p31
    %p38 = scmp.eq.s32.totalorder %s10, 8
    %p39 = por %p37, %p38
    %p40 = scmp.ne.s32.totalorder %s32, %s35
    %p41 = scmp.eq.s32.totalorder %s10, 0
    %p42 = por %p40, %p41
    %p43 = scmp.ne.s32.totalorder %s32, %s35
    %p44 = scmp.eq.s32.totalorder %s15, 8
    %p45 = por %p43, %p44
    %p46 = scmp.ne.s32.totalorder %s35, %s36
    %p47 = scmp.eq.s32.totalorder %s15, 0
    %p48 = por %p46, %p47
    %p49 = scmp.ne.s32.totalorder %s35, %s36
    %p50 = scmp.eq.s32.totalorder %s16, 8
    %p51 = por %p49, %p50
    %p53 = scmp.ne.s32.totalorder %s36, %s52
    %p54 = scmp.eq.s32.totalorder %s16, 0
    %p55 = por %p53, %p54
    %s56 = ssub.s32 %s18, %s25
    %p57 = scmp.eq.s32.totalorder %s56, 0
    %s59 = sadd.s32 %s58, 1
    %s60 = scalar_select %p57, %s58, %s59
    %p63 = pneg %p57
    %p64 = scmp.eq.s32.totalorder %s10, 8
    %p65 = por %p63, %p64
    %p66 = scmp.ne.s32.totalorder %s58, %s61
    %p67 = scmp.eq.s32.totalorder %s10, 0
    %p68 = por %p66, %p67
    %p69 = scmp.ne.s32.totalorder %s58, %s61
    %p70 = scmp.eq.s32.totalorder %s15, 8
    %p71 = por %p69, %p70
    %p72 = scmp.ne.s32.totalorder %s61, %s62
    %p73 = scmp.eq.s32.totalorder %s15, 0
    %p74 = por %p72, %p73
    %p75 = scmp.ne.s32.totalorder %s61, %s62
    %p76 = scmp.eq.s32.totalorder %s16, 8
    %p77 = por %p75, %p76
    %p79 = scmp.ne.s32.totalorder %s62, %s78
    %p80 = scmp.eq.s32.totalorder %s16, 0
    %p81 = por %p79, %p80
    %s82 = ssub.s32 %s17, %s29
    %p83 = scmp.eq.s32.totalorder %s82, 0
    %s85 = sadd.s32 %s84, 1
    %s86 = scalar_select %p83, %s84, %s85
    %p89 = pneg %p83
    %p90 = scmp.eq.s32.totalorder %s10, 8
    %p91 = por %p89, %p90
    %p92 = scmp.ne.s32.totalorder %s84, %s87
    %p93 = scmp.eq.s32.totalorder %s10, 0
    %p94 = por %p92, %p93
    %p95 = scmp.ne.s32.totalorder %s84, %s87
    %p96 = scmp.eq.s32.totalorder %s15, 8
    %p97 = por %p95, %p96
    %p98 = scmp.ne.s32.totalorder %s87, %s88
    %p99 = scmp.eq.s32.totalorder %s15, 0
    %p100 = por %p98, %p99
    %p101 = scmp.ne.s32.totalorder %s87, %s88
    %p102 = scmp.eq.s32.totalorder %s16, 8
    %p103 = por %p101, %p102
    %p105 = scmp.ne.s32.totalorder %s88, %s104
    %p106 = scmp.eq.s32.totalorder %s16, 0
    %p107 = por %p105, %p106
    %s108 = ssub.s32 %s18, %s25
    %p109 = scmp.eq.s32.totalorder %s108, 0
    %s111 = sadd.s32 %s110, 1
    %s112 = scalar_select %p109, %s110, %s111
    %p115 = pneg %p109
    %p116 = scmp.eq.s32.totalorder %s10, 8
    %p117 = por %p115, %p116
    %p118 = scmp.ne.s32.totalorder %s110, %s113
    %p119 = scmp.eq.s32.totalorder %s10, 0
    %p120 = por %p118, %p119
    %p121 = scmp.ne.s32.totalorder %s110, %s113
    %p122 = scmp.eq.s32.totalorder %s15, 8
    %p123 = por %p121, %p122
    %p124 = scmp.ne.s32.totalorder %s113, %s114
    %p125 = scmp.eq.s32.totalorder %s15, 0
    %p126 = por %p124, %p125
    %p127 = scmp.ne.s32.totalorder %s113, %s114
    %p128 = scmp.eq.s32.totalorder %s16, 8
    %p129 = por %p127, %p128
    %p131 = scmp.ne.s32.totalorder %s114, %s130
    %p132 = scmp.eq.s32.totalorder %s16, 0
    %p133 = por %p131, %p132
    %s134 = ssub.s32 %s17, %s29
    %p135 = scmp.eq.s32.totalorder %s134, 0
    %s137 = sadd.s32 %s136, 1
    %s138 = scalar_select %p135, %s136, %s137
    %p141 = pneg %p135
    %p142 = scmp.eq.s32.totalorder %s10, 8
    %p143 = por %p141, %p142
    %p144 = scmp.ne.s32.totalorder %s136, %s139
    %p145 = scmp.eq.s32.totalorder %s10, 0
    %p146 = por %p144, %p145
    %p147 = scmp.ne.s32.totalorder %s136, %s139
    %p148 = scmp.eq.s32.totalorder %s15, 8
    %p149 = por %p147, %p148
    %p150 = scmp.ne.s32.totalorder %s139, %s140
    %p151 = scmp.eq.s32.totalorder %s15, 0
    %p152 = por %p150, %p151
    %p153 = scmp.ne.s32.totalorder %s139, %s140
    %p154 = scmp.eq.s32.totalorder %s16, 8
    %p155 = por %p153, %p154
    %p157 = scmp.ne.s32.totalorder %s140, %s156
    %p158 = scmp.eq.s32.totalorder %s16, 0
    %p159 = por %p157, %p158
    %p160 = scmp.le.s32.totalorder 1, %s10
    %p161 = scmp.lt.s32.totalorder %s10, 10
    %p162 = pnand %p160, %p161
    %p163 = pneg %p162
    // Predicated region
    $region9: #{tpu_custom_call.1} parent=5 // pred_check
      _
    $region10: #{tpu_custom_call.1} parent=5 // pred_check_branch
      %165 = sbr.rel (%p162) target = $region12
    $region11: #{tpu_custom_call.1} parent=5 // pred_region
      %s166 = ssub.s32 %s10, 1
    $region12: #{tpu_custom_call.1} parent=5 // pred_fallthru
      _
    %p167 = scmp.lt.s32.totalorder %s10, 9
    // Predicated region
    $region13: #{tpu_custom_call.1} parent=5 // pred_check
      %p168 = pneg %p167
    $region14: #{tpu_custom_call.1} parent=5 // pred_check_branch
      %170 = sbr.rel (%p168) target = $region16
    $region15: #{tpu_custom_call.1} parent=5 // pred_region
      // Predicated region
      $region17: #{tpu_custom_call.1} parent=15 // pred_check
        %p171 = pneg %p42
      $region18: #{tpu_custom_call.1} parent=15 // pred_check_branch
        %173 = sbr.rel (%p171) target = $region20
      $region19: #{tpu_custom_call.1} parent=15 // pred_region
        %s174 = smul.u32 16, %s17
        %p175 = scmp.lt.s32.totalorder %s174, 47
        %s176 = scalar_select %p175, %s174, 47
        %s177 = smul.addr %s176, 8
        %s178 = scalar_lea.vmem %s0, %s177
        %s179 = smul.u32 16, %s17
      $region20: #{tpu_custom_call.1} parent=15 // pred_fallthru
        _
      // Predicated region
      $region21: #{tpu_custom_call.1} parent=15 // pred_check
        %p180 = pneg %p68
      $region22: #{tpu_custom_call.1} parent=15 // pred_check_branch
        %182 = sbr.rel (%p180) target = $region24
      $region23: #{tpu_custom_call.1} parent=15 // pred_region
        %s183 = smul.u32 16, %s18
        %p184 = scmp.lt.s32.totalorder %s183, 47
        %s185 = scalar_select %p184, %s183, 47
        %s186 = smul.addr %s185, 8
        %s187 = scalar_lea.vmem %s1, %s186
        %s188 = smul.u32 16, %s18
      $region24: #{tpu_custom_call.1} parent=15 // pred_fallthru
        _
      // Predicated region
      $region25: #{tpu_custom_call.1} parent=15 // pred_check
        %p189 = pneg %p94
      $region26: #{tpu_custom_call.1} parent=15 // pred_check_branch
        %191 = sbr.rel (%p189) target = $region28
      $region27: #{tpu_custom_call.1} parent=15 // pred_region
        %s192 = smul.u32 16, %s17
        %p193 = scmp.lt.s32.totalorder %s192, 47
        %s194 = scalar_select %p193, %s192, 47
        %s195 = smul.addr %s194, 8
        %s196 = scalar_lea.vmem %s2, %s195
        %s197 = smul.u32 16, %s17
      $region28: #{tpu_custom_call.1} parent=15 // pred_fallthru
        _
      // Predicated region
      $region29: #{tpu_custom_call.1} parent=15 // pred_check
        %p198 = pneg %p120
      $region30: #{tpu_custom_call.1} parent=15 // pred_check_branch
        %200 = sbr.rel (%p198) target = $region32
      $region31: #{tpu_custom_call.1} parent=15 // pred_region
        %p201 = scmp.lt.s32.totalorder %s18, 2
        %s202 = scalar_select %p201, %s18, 2
        %s203 = scalar_lea.vmem %s3, %s202
      $region32: #{tpu_custom_call.1} parent=15 // pred_fallthru
        _
    $region16: #{tpu_custom_call.1} parent=5 // pred_fallthru
      _
    %p204 = scmp.le.s32.totalorder 1, %s10
    %p205 = scmp.lt.s32.totalorder %s10, 10
    %p206 = pnand %p204, %p205
    %p207 = pneg %p206
    // Predicated region
    $region33: #{tpu_custom_call.1} parent=5 // pred_check
      _
    $region34: #{tpu_custom_call.1} parent=5 // pred_check_branch
      %209 = sbr.rel (%p206) target = $region36
    $region35: #{tpu_custom_call.1} parent=5 // pred_region
      %s210 = ssub.s32 %s10, 1
      %s211 = smul.u32 16, %s19
      %p212 = scmp.lt.s32.totalorder %s211, 47
      %s213 = scalar_select %p212, %s211, 47
      %s214 = smul.addr %s213, 8
      %s215 = scalar_lea.vmem %s0, %s214
      %p216 = pneg %p48
      %p217 = pneg %p45
      %s218 = smul.u32 16, %s20
      %p219 = scmp.lt.s32.totalorder %s218, 47
      %s220 = scalar_select %p219, %s218, 47
      %s221 = smul.addr %s220, 8
      %s222 = scalar_lea.vmem %s1, %s221
      %p223 = pneg %p74
      %p224 = pneg %p71
      %s225 = smul.u32 16, %s19
      %p226 = scmp.lt.s32.totalorder %s225, 47
      %s227 = scalar_select %p226, %s225, 47
      %s228 = smul.addr %s227, 8
      %s229 = scalar_lea.vmem %s2, %s228
      %p230 = pneg %p100
      %p231 = pneg %p97
      %p232 = scmp.lt.s32.totalorder %s20, 2
      %s233 = scalar_select %p232, %s20, 2
      %s234 = scalar_lea.vmem %s3, %s233
      %p235 = pneg %p126
      %p236 = pneg %p123
      %p237 = pneg %p152
      %p238 = pneg %p149
      %s239 = smul.u32 16, %s19
      %p240 = scmp.lt.s32.totalorder %s239, 47
      %s241 = scalar_select %p240, %s239, 47
      %s242 = smul.addr %s241, 8
      %s243 = scalar_lea.vmem %s4, %s242
      %s244 = smul.u32 16, %s19
      %p245 = scmp.lt.s32.totalorder %s244, 47
      %s246 = scalar_select %p245, %s244, 47
      %s247 = smul.addr %s246, 8
      %s248 = scalar_lea.vmem %s0, %s247
      %s249 = smul.u32 16, %s19
      %s250 = smul.u32 16, %s20
      %p251 = scmp.lt.s32.totalorder %s250, 47
      %s252 = scalar_select %p251, %s250, 47
      %s253 = smul.addr %s252, 8
      %s254 = scalar_lea.vmem %s1, %s253
      %s255 = smul.u32 16, %s20
      %s256 = smul.u32 16, %s19
      %p257 = scmp.lt.s32.totalorder %s256, 47
      %s258 = scalar_select %p257, %s256, 47
      %s259 = smul.addr %s258, 8
      %s260 = scalar_lea.vmem %s2, %s259
      %s261 = smul.u32 16, %s19
      %p262 = scmp.lt.s32.totalorder %s20, 2
      %s263 = scalar_select %p262, %s20, 2
      %s264 = scalar_lea.vmem %s3, %s263
      %s265 = smul.u32 16, %s19
      %p266 = scmp.lt.s32.totalorder %s265, 47
      %s267 = scalar_select %p266, %s265, 47
      %s268 = smul.addr %s267, 8
      %s269 = scalar_lea.vmem %s4, %s268
      %s270 = smul.u32 16, %s19
      %p271 = scmp.eq.s32.totalorder %s20, 0
      // Predicated region
      $region37: #{tpu_custom_call.1} parent=35 // pred_check
        %p272 = pneg %p271
      $region38: #{tpu_custom_call.1} parent=35 // pred_check_branch
        %274 = sbr.rel (%p272) target = $region40
      $region39: #{tpu_custom_call.1} parent=35 // pred_region
        %v275 = vld [vmem:[%s248] sm:$0xff]
        %v276 = vld [vmem:[%s248 + $0x8] sm:$0xff]
        %v277 = vld [vmem:[%s248 + $0x10] sm:$0xff]
        %v278 = vld [vmem:[%s248 + $0x18] sm:$0xff]
        %v279 = vld [vmem:[%s248 + $0x20] sm:$0xff]
        %v280 = vld [vmem:[%s248 + $0x28] sm:$0xff]
        %v281 = vld [vmem:[%s248 + $0x30] sm:$0xff]
        %v282 = vld [vmem:[%s248 + $0x38] sm:$0xff]
        %v283 = vld [vmem:[%s248 + $0x40] sm:$0xff]
        %v284 = vld [vmem:[%s248 + $0x48] sm:$0xff]
        %v285 = vld [vmem:[%s248 + $0x50] sm:$0xff]
        %v286 = vld [vmem:[%s248 + $0x58] sm:$0xff]
        %v287 = vld [vmem:[%s248 + $0x60] sm:$0xff]
        %v288 = vld [vmem:[%s248 + $0x68] sm:$0xff]
        %v289 = vld [vmem:[%s248 + $0x70] sm:$0xff]
        %v290 = vld [vmem:[%s248 + $0x78] sm:$0xff]
        %v291 = vmul.f32 %v275, %v275
        %v292 = vmul.f32 %v276, %v276
        %v293 = vmul.f32 %v277, %v277
        %v294 = vmul.f32 %v278, %v278
        %v295 = vmul.f32 %v279, %v279
        %v296 = vmul.f32 %v280, %v280
        %v297 = vmul.f32 %v281, %v281
        %v298 = vmul.f32 %v282, %v282
        %v299 = vmul.f32 %v283, %v283
        %v300 = vmul.f32 %v284, %v284
        %v301 = vmul.f32 %v285, %v285
        %v302 = vmul.f32 %v286, %v286
        %v303 = vmul.f32 %v287, %v287
        %v304 = vmul.f32 %v288, %v288
        %v305 = vmul.f32 %v289, %v289
        %v306 = vmul.f32 %v290, %v290
        %vm307 = vcmask 523264
        %v308 = vsel %vm307, %v291, 0.0
        %309 = vadd.xlane.f32.xlu0 %v308
        %v310 = vpop.xlane.xlu0 %309
        %v311 = vsel %vm307, %v292, 0.0
        %312 = vadd.xlane.f32.xlu0 %v311
        %v313 = vpop.xlane.xlu0 %312
        %v314 = vsel %vm307, %v293, 0.0
        %315 = vadd.xlane.f32.xlu0 %v314
        %v316 = vpop.xlane.xlu0 %315
        %v317 = vsel %vm307, %v294, 0.0
        %318 = vadd.xlane.f32.xlu0 %v317
        %v319 = vpop.xlane.xlu0 %318
        %v320 = vsel %vm307, %v295, 0.0
        %321 = vadd.xlane.f32.xlu0 %v320
        %v322 = vpop.xlane.xlu0 %321
        %v323 = vsel %vm307, %v296, 0.0
        %324 = vadd.xlane.f32.xlu0 %v323
        %v325 = vpop.xlane.xlu0 %324
        %v326 = vsel %vm307, %v297, 0.0
        %327 = vadd.xlane.f32.xlu0 %v326
        %v328 = vpop.xlane.xlu0 %327
        %v329 = vsel %vm307, %v298, 0.0
        %330 = vadd.xlane.f32.xlu0 %v329
        %v331 = vpop.xlane.xlu0 %330
        %v332 = vsel %vm307, %v299, 0.0
        %333 = vadd.xlane.f32.xlu0 %v332
        %v334 = vpop.xlane.xlu0 %333
        %v335 = vsel %vm307, %v300, 0.0
        %336 = vadd.xlane.f32.xlu0 %v335
        %v337 = vpop.xlane.xlu0 %336
        %v338 = vsel %vm307, %v301, 0.0
        %339 = vadd.xlane.f32.xlu0 %v338
        %v340 = vpop.xlane.xlu0 %339
        %v341 = vsel %vm307, %v302, 0.0
        %342 = vadd.xlane.f32.xlu0 %v341
        %v343 = vpop.xlane.xlu0 %342
        %v344 = vsel %vm307, %v303, 0.0
        %345 = vadd.xlane.f32.xlu0 %v344
        %v346 = vpop.xlane.xlu0 %345
        %v347 = vsel %vm307, %v304, 0.0
        %348 = vadd.xlane.f32.xlu0 %v347
        %v349 = vpop.xlane.xlu0 %348
        %v350 = vsel %vm307, %v305, 0.0
        %351 = vadd.xlane.f32.xlu0 %v350
        %v352 = vpop.xlane.xlu0 %351
        %v353 = vsel %vm307, %v306, 0.0
        %354 = vadd.xlane.f32.xlu0 %v353
        %v355 = vpop.xlane.xlu0 %354
        %v356 = vmax.f32 %v310, 1e-24
        %v357 = vmax.f32 %v313, 1e-24
        %v358 = vmax.f32 %v316, 1e-24
        %v359 = vmax.f32 %v319, 1e-24
        %v360 = vmax.f32 %v322, 1e-24
        %v361 = vmax.f32 %v325, 1e-24
        %v362 = vmax.f32 %v328, 1e-24
        %v363 = vmax.f32 %v331, 1e-24
        %v364 = vmax.f32 %v334, 1e-24
        %v365 = vmax.f32 %v337, 1e-24
        %v366 = vmax.f32 %v340, 1e-24
        %v367 = vmax.f32 %v343, 1e-24
        %v368 = vmax.f32 %v346, 1e-24
        %v369 = vmax.f32 %v349, 1e-24
        %v370 = vmax.f32 %v352, 1e-24
        %v371 = vmax.f32 %v355, 1e-24
        %v372 = vrsqrt.pop %v356
        %v373 = vrsqrt.pop %v357
        %v374 = vrsqrt.pop %v358
        %v375 = vrsqrt.pop %v359
        %v376 = vrsqrt.pop %v360
        %v377 = vrsqrt.pop %v361
        %v378 = vrsqrt.pop %v362
        %v379 = vrsqrt.pop %v363
        %v380 = vrsqrt.pop %v364
        %v381 = vrsqrt.pop %v365
        %v382 = vrsqrt.pop %v366
        %v383 = vrsqrt.pop %v367
        %v384 = vrsqrt.pop %v368
        %v385 = vrsqrt.pop %v369
        %v386 = vrsqrt.pop %v370
        %v387 = vrsqrt.pop %v371
        %v388 = vmul.f32 %v275, %v372
        %v389 = vmul.f32 %v276, %v373
        %v390 = vmul.f32 %v277, %v374
        %v391 = vmul.f32 %v278, %v375
        %v392 = vmul.f32 %v279, %v376
        %v393 = vmul.f32 %v280, %v377
        %v394 = vmul.f32 %v281, %v378
        %v395 = vmul.f32 %v282, %v379
        %v396 = vmul.f32 %v283, %v380
        %v397 = vmul.f32 %v284, %v381
        %v398 = vmul.f32 %v285, %v382
        %v399 = vmul.f32 %v286, %v383
        %v400 = vmul.f32 %v287, %v384
        %v401 = vmul.f32 %v288, %v385
        %v402 = vmul.f32 %v289, %v386
        %v403 = vmul.f32 %v290, %v387
        %404 = vst.msk [vmem:[#allocation2] sm:$0xff] %vm307, %v388
        %405 = vst.msk [vmem:[#allocation2 + $0x8] sm:$0xff] %vm307, %v389
        %406 = vst.msk [vmem:[#allocation2 + $0x10] sm:$0xff] %vm307, %v390
        %407 = vst.msk [vmem:[#allocation2 + $0x18] sm:$0xff] %vm307, %v391
        %408 = vst.msk [vmem:[#allocation2 + $0x20] sm:$0xff] %vm307, %v392
        %409 = vst.msk [vmem:[#allocation2 + $0x28] sm:$0xff] %vm307, %v393
        %410 = vst.msk [vmem:[#allocation2 + $0x30] sm:$0xff] %vm307, %v394
        %411 = vst.msk [vmem:[#allocation2 + $0x38] sm:$0xff] %vm307, %v395
        %412 = vst.msk [vmem:[#allocation2 + $0x40] sm:$0xff] %vm307, %v396
        %413 = vst.msk [vmem:[#allocation2 + $0x48] sm:$0xff] %vm307, %v397
        %414 = vst.msk [vmem:[#allocation2 + $0x50] sm:$0xff] %vm307, %v398
        %415 = vst.msk [vmem:[#allocation2 + $0x58] sm:$0xff] %vm307, %v399
        %416 = vst.msk [vmem:[#allocation2 + $0x60] sm:$0xff] %vm307, %v400
        %417 = vst.msk [vmem:[#allocation2 + $0x68] sm:$0xff] %vm307, %v401
        %418 = vst.msk [vmem:[#allocation2 + $0x70] sm:$0xff] %vm307, %v402
        %419 = vst.msk [vmem:[#allocation2 + $0x78] sm:$0xff] %vm307, %v403
        %v420 = vmul.f32 %v388, %v388
        %v421 = vmul.f32 %v389, %v389
        %v422 = vmul.f32 %v390, %v390
        %v423 = vmul.f32 %v391, %v391
        %v424 = vmul.f32 %v392, %v392
        %v425 = vmul.f32 %v393, %v393
        %v426 = vmul.f32 %v394, %v394
        %v427 = vmul.f32 %v395, %v395
        %v428 = vmul.f32 %v396, %v396
        %v429 = vmul.f32 %v397, %v397
        %v430 = vmul.f32 %v398, %v398
        %v431 = vmul.f32 %v399, %v399
        %v432 = vmul.f32 %v400, %v400
        %v433 = vmul.f32 %v401, %v401
        %v434 = vmul.f32 %v402, %v402
        %v435 = vmul.f32 %v403, %v403
        %v436 = vsel %vm307, %v420, 0.0
        %437 = vadd.xlane.f32.xlu0 %v436
        %v438 = vpop.xlane.xlu0 %437
        %v439 = vsel %vm307, %v421, 0.0
        %440 = vadd.xlane.f32.xlu0 %v439
        %v441 = vpop.xlane.xlu0 %440
        %v442 = vsel %vm307, %v422, 0.0
        %443 = vadd.xlane.f32.xlu0 %v442
        %v444 = vpop.xlane.xlu0 %443
        %v445 = vsel %vm307, %v423, 0.0
        %446 = vadd.xlane.f32.xlu0 %v445
        %v447 = vpop.xlane.xlu0 %446
        %v448 = vsel %vm307, %v424, 0.0
        %449 = vadd.xlane.f32.xlu0 %v448
        %v450 = vpop.xlane.xlu0 %449
        %v451 = vsel %vm307, %v425, 0.0
        %452 = vadd.xlane.f32.xlu0 %v451
        %v453 = vpop.xlane.xlu0 %452
        %v454 = vsel %vm307, %v426, 0.0
        %455 = vadd.xlane.f32.xlu0 %v454
        %v456 = vpop.xlane.xlu0 %455
        %v457 = vsel %vm307, %v427, 0.0
        %458 = vadd.xlane.f32.xlu0 %v457
        %v459 = vpop.xlane.xlu0 %458
        %v460 = vsel %vm307, %v428, 0.0
        %461 = vadd.xlane.f32.xlu0 %v460
        %v462 = vpop.xlane.xlu0 %461
        %v463 = vsel %vm307, %v429, 0.0
        %464 = vadd.xlane.f32.xlu0 %v463
        %v465 = vpop.xlane.xlu0 %464
        %v466 = vsel %vm307, %v430, 0.0
        %467 = vadd.xlane.f32.xlu0 %v466
        %v468 = vpop.xlane.xlu0 %467
        %v469 = vsel %vm307, %v431, 0.0
        %470 = vadd.xlane.f32.xlu0 %v469
        %v471 = vpop.xlane.xlu0 %470
        %v472 = vsel %vm307, %v432, 0.0
        %473 = vadd.xlane.f32.xlu0 %v472
        %v474 = vpop.xlane.xlu0 %473
        %v475 = vsel %vm307, %v433, 0.0
        %476 = vadd.xlane.f32.xlu0 %v475
        %v477 = vpop.xlane.xlu0 %476
        %v478 = vsel %vm307, %v434, 0.0
        %479 = vadd.xlane.f32.xlu0 %v478
        %v480 = vpop.xlane.xlu0 %479
        %v481 = vsel %vm307, %v435, 0.0
        %482 = vadd.xlane.f32.xlu0 %v481
        %v483 = vpop.xlane.xlu0 %482
        %vm484 = vcmask 7168
        %485 = vst.msk [vmem:[#allocation3] sm:$0xff] %vm484, %v438
        %486 = vst.msk [vmem:[#allocation3 + $0x8] sm:$0xff] %vm484, %v441
        %487 = vst.msk [vmem:[#allocation3 + $0x10] sm:$0xff] %vm484, %v444
        %488 = vst.msk [vmem:[#allocation3 + $0x18] sm:$0xff] %vm484, %v447
        %489 = vst.msk [vmem:[#allocation3 + $0x20] sm:$0xff] %vm484, %v450
        %490 = vst.msk [vmem:[#allocation3 + $0x28] sm:$0xff] %vm484, %v453
        %491 = vst.msk [vmem:[#allocation3 + $0x30] sm:$0xff] %vm484, %v456
        %492 = vst.msk [vmem:[#allocation3 + $0x38] sm:$0xff] %vm484, %v459
        %493 = vst.msk [vmem:[#allocation3 + $0x40] sm:$0xff] %vm484, %v462
        %494 = vst.msk [vmem:[#allocation3 + $0x48] sm:$0xff] %vm484, %v465
        %495 = vst.msk [vmem:[#allocation3 + $0x50] sm:$0xff] %vm484, %v468
        %496 = vst.msk [vmem:[#allocation3 + $0x58] sm:$0xff] %vm484, %v471
        %497 = vst.msk [vmem:[#allocation3 + $0x60] sm:$0xff] %vm484, %v474
        %498 = vst.msk [vmem:[#allocation3 + $0x68] sm:$0xff] %vm484, %v477
        %499 = vst.msk [vmem:[#allocation3 + $0x70] sm:$0xff] %vm484, %v480
        %500 = vst.msk [vmem:[#allocation3 + $0x78] sm:$0xff] %vm484, %v483
        %501 = vst.msk [vmem:[#allocation4] sm:$0xff] %vm484, -inf
        %502 = vst.msk [vmem:[#allocation4 + $0x8] sm:$0xff] %vm484, -inf
        %503 = vst.msk [vmem:[#allocation4 + $0x10] sm:$0xff] %vm484, -inf
        %504 = vst.msk [vmem:[#allocation4 + $0x18] sm:$0xff] %vm484, -inf
        %505 = vst.msk [vmem:[#allocation4 + $0x20] sm:$0xff] %vm484, -inf
        %506 = vst.msk [vmem:[#allocation4 + $0x28] sm:$0xff] %vm484, -inf
        %507 = vst.msk [vmem:[#allocation4 + $0x30] sm:$0xff] %vm484, -inf
        %508 = vst.msk [vmem:[#allocation4 + $0x38] sm:$0xff] %vm484, -inf
        %509 = vst.msk [vmem:[#allocation4 + $0x40] sm:$0xff] %vm484, -inf
        %510 = vst.msk [vmem:[#allocation4 + $0x48] sm:$0xff] %vm484, -inf
        %511 = vst.msk [vmem:[#allocation4 + $0x50] sm:$0xff] %vm484, -inf
        %512 = vst.msk [vmem:[#allocation4 + $0x58] sm:$0xff] %vm484, -inf
        %513 = vst.msk [vmem:[#allocation4 + $0x60] sm:$0xff] %vm484, -inf
        %514 = vst.msk [vmem:[#allocation4 + $0x68] sm:$0xff] %vm484, -inf
        %515 = vst.msk [vmem:[#allocation4 + $0x70] sm:$0xff] %vm484, -inf
        %516 = vst.msk [vmem:[#allocation4 + $0x78] sm:$0xff] %vm484, -inf
        %517 = vst.msk [vmem:[#allocation5] sm:$0xff] %vm484, 0.0
        %518 = vst.msk [vmem:[#allocation5 + $0x8] sm:$0xff] %vm484, 0.0
        %519 = vst.msk [vmem:[#allocation5 + $0x10] sm:$0xff] %vm484, 0.0
        %520 = vst.msk [vmem:[#allocation5 + $0x18] sm:$0xff] %vm484, 0.0
        %521 = vst.msk [vmem:[#allocation5 + $0x20] sm:$0xff] %vm484, 0.0
        %522 = vst.msk [vmem:[#allocation5 + $0x28] sm:$0xff] %vm484, 0.0
        %523 = vst.msk [vmem:[#allocation5 + $0x30] sm:$0xff] %vm484, 0.0
        %524 = vst.msk [vmem:[#allocation5 + $0x38] sm:$0xff] %vm484, 0.0
        %525 = vst.msk [vmem:[#allocation5 + $0x40] sm:$0xff] %vm484, 0.0
        %526 = vst.msk [vmem:[#allocation5 + $0x48] sm:$0xff] %vm484, 0.0
        %527 = vst.msk [vmem:[#allocation5 + $0x50] sm:$0xff] %vm484, 0.0
        %528 = vst.msk [vmem:[#allocation5 + $0x58] sm:$0xff] %vm484, 0.0
        %529 = vst.msk [vmem:[#allocation5 + $0x60] sm:$0xff] %vm484, 0.0
        %530 = vst.msk [vmem:[#allocation5 + $0x68] sm:$0xff] %vm484, 0.0
        %531 = vst.msk [vmem:[#allocation5 + $0x70] sm:$0xff] %vm484, 0.0
        %532 = vst.msk [vmem:[#allocation5 + $0x78] sm:$0xff] %vm484, 0.0
        %533 = vst.msk [vmem:[#allocation6] sm:$0xff] %vm484, 0.0
        %534 = vst.msk [vmem:[#allocation6 + $0x8] sm:$0xff] %vm484, 0.0
        %535 = vst.msk [vmem:[#allocation6 + $0x10] sm:$0xff] %vm484, 0.0
        %536 = vst.msk [vmem:[#allocation6 + $0x18] sm:$0xff] %vm484, 0.0
        %537 = vst.msk [vmem:[#allocation6 + $0x20] sm:$0xff] %vm484, 0.0
        %538 = vst.msk [vmem:[#allocation6 + $0x28] sm:$0xff] %vm484, 0.0
        %539 = vst.msk [vmem:[#allocation6 + $0x30] sm:$0xff] %vm484, 0.0
        %540 = vst.msk [vmem:[#allocation6 + $0x38] sm:$0xff] %vm484, 0.0
        %541 = vst.msk [vmem:[#allocation6 + $0x40] sm:$0xff] %vm484, 0.0
        %542 = vst.msk [vmem:[#allocation6 + $0x48] sm:$0xff] %vm484, 0.0
        %543 = vst.msk [vmem:[#allocation6 + $0x50] sm:$0xff] %vm484, 0.0
        %544 = vst.msk [vmem:[#allocation6 + $0x58] sm:$0xff] %vm484, 0.0
        %545 = vst.msk [vmem:[#allocation6 + $0x60] sm:$0xff] %vm484, 0.0
        %546 = vst.msk [vmem:[#allocation6 + $0x68] sm:$0xff] %vm484, 0.0
        %547 = vst.msk [vmem:[#allocation6 + $0x70] sm:$0xff] %vm484, 0.0
        %548 = vst.msk [vmem:[#allocation6 + $0x78] sm:$0xff] %vm484, 0.0
        %549 = vst.msk [vmem:[#allocation7] sm:$0xff] %vm484, 0.0
        %550 = vst.msk [vmem:[#allocation7 + $0x8] sm:$0xff] %vm484, 0.0
        %551 = vst.msk [vmem:[#allocation7 + $0x10] sm:$0xff] %vm484, 0.0
        %552 = vst.msk [vmem:[#allocation7 + $0x18] sm:$0xff] %vm484, 0.0
        %553 = vst.msk [vmem:[#allocation7 + $0x20] sm:$0xff] %vm484, 0.0
        %554 = vst.msk [vmem:[#allocation7 + $0x28] sm:$0xff] %vm484, 0.0
        %555 = vst.msk [vmem:[#allocation7 + $0x30] sm:$0xff] %vm484, 0.0
        %556 = vst.msk [vmem:[#allocation7 + $0x38] sm:$0xff] %vm484, 0.0
        %557 = vst.msk [vmem:[#allocation7 + $0x40] sm:$0xff] %vm484, 0.0
        %558 = vst.msk [vmem:[#allocation7 + $0x48] sm:$0xff] %vm484, 0.0
        %559 = vst.msk [vmem:[#allocation7 + $0x50] sm:$0xff] %vm484, 0.0
        %560 = vst.msk [vmem:[#allocation7 + $0x58] sm:$0xff] %vm484, 0.0
        %561 = vst.msk [vmem:[#allocation7 + $0x60] sm:$0xff] %vm484, 0.0
        %562 = vst.msk [vmem:[#allocation7 + $0x68] sm:$0xff] %vm484, 0.0
        %563 = vst.msk [vmem:[#allocation7 + $0x70] sm:$0xff] %vm484, 0.0
        %564 = vst.msk [vmem:[#allocation7 + $0x78] sm:$0xff] %vm484, 0.0
      $region40: #{tpu_custom_call.1} parent=35 // pred_fallthru
        _
      %v565 = vld [vmem:[%s254] sm:$0xff]
      %v566 = vld [vmem:[%s254 + $0x8] sm:$0xff]
      %v567 = vld [vmem:[%s254 + $0x10] sm:$0xff]
      %v568 = vld [vmem:[%s254 + $0x18] sm:$0xff]
      %v569 = vld [vmem:[%s254 + $0x20] sm:$0xff]
      %v570 = vld [vmem:[%s254 + $0x28] sm:$0xff]
      %v571 = vld [vmem:[%s254 + $0x30] sm:$0xff]
      %v572 = vld [vmem:[%s254 + $0x38] sm:$0xff]
      %v573 = vld [vmem:[%s254 + $0x40] sm:$0xff]
      %v574 = vld [vmem:[%s254 + $0x48] sm:$0xff]
      %v575 = vld [vmem:[%s254 + $0x50] sm:$0xff]
      %v576 = vld [vmem:[%s254 + $0x58] sm:$0xff]
      %v577 = vld [vmem:[%s254 + $0x60] sm:$0xff]
      %v578 = vld [vmem:[%s254 + $0x68] sm:$0xff]
      %v579 = vld [vmem:[%s254 + $0x70] sm:$0xff]
      %v580 = vld [vmem:[%s254 + $0x78] sm:$0xff]
      %v581 = vmul.f32 %v565, %v565
      %v582 = vmul.f32 %v566, %v566
      %v583 = vmul.f32 %v567, %v567
      %v584 = vmul.f32 %v568, %v568
      %v585 = vmul.f32 %v569, %v569
      %v586 = vmul.f32 %v570, %v570
      %v587 = vmul.f32 %v571, %v571
      %v588 = vmul.f32 %v572, %v572
      %v589 = vmul.f32 %v573, %v573
      %v590 = vmul.f32 %v574, %v574
      %v591 = vmul.f32 %v575, %v575
      %v592 = vmul.f32 %v576, %v576
      %v593 = vmul.f32 %v577, %v577
      %v594 = vmul.f32 %v578, %v578
      %v595 = vmul.f32 %v579, %v579
      %v596 = vmul.f32 %v580, %v580
      %vm597 = vcmask 523264
      %v598 = vsel %vm597, %v581, 0.0
      %599 = vadd.xlane.f32.xlu0 %v598
      %v600 = vpop.xlane.xlu0 %599
      %v601 = vsel %vm597, %v582, 0.0
      %602 = vadd.xlane.f32.xlu0 %v601
      %v603 = vpop.xlane.xlu0 %602
      %v604 = vsel %vm597, %v583, 0.0
      %605 = vadd.xlane.f32.xlu0 %v604
      %v606 = vpop.xlane.xlu0 %605
      %v607 = vsel %vm597, %v584, 0.0
      %608 = vadd.xlane.f32.xlu0 %v607
      %v609 = vpop.xlane.xlu0 %608
      %v610 = vsel %vm597, %v585, 0.0
      %611 = vadd.xlane.f32.xlu0 %v610
      %v612 = vpop.xlane.xlu0 %611
      %v613 = vsel %vm597, %v586, 0.0
      %614 = vadd.xlane.f32.xlu0 %v613
      %v615 = vpop.xlane.xlu0 %614
      %v616 = vsel %vm597, %v587, 0.0
      %617 = vadd.xlane.f32.xlu0 %v616
      %v618 = vpop.xlane.xlu0 %617
      %v619 = vsel %vm597, %v588, 0.0
      %620 = vadd.xlane.f32.xlu0 %v619
      %v621 = vpop.xlane.xlu0 %620
      %v622 = vsel %vm597, %v589, 0.0
      %623 = vadd.xlane.f32.xlu0 %v622
      %v624 = vpop.xlane.xlu0 %623
      %v625 = vsel %vm597, %v590, 0.0
      %626 = vadd.xlane.f32.xlu0 %v625
      %v627 = vpop.xlane.xlu0 %626
      %v628 = vsel %vm597, %v591, 0.0
      %629 = vadd.xlane.f32.xlu0 %v628
      %v630 = vpop.xlane.xlu0 %629
      %v631 = vsel %vm597, %v592, 0.0
      %632 = vadd.xlane.f32.xlu0 %v631
      %v633 = vpop.xlane.xlu0 %632
      %v634 = vsel %vm597, %v593, 0.0
      %635 = vadd.xlane.f32.xlu0 %v634
      %v636 = vpop.xlane.xlu0 %635
      %v637 = vsel %vm597, %v594, 0.0
      %638 = vadd.xlane.f32.xlu0 %v637
      %v639 = vpop.xlane.xlu0 %638
      %v640 = vsel %vm597, %v595, 0.0
      %641 = vadd.xlane.f32.xlu0 %v640
      %v642 = vpop.xlane.xlu0 %641
      %v643 = vsel %vm597, %v596, 0.0
      %644 = vadd.xlane.f32.xlu0 %v643
      %v645 = vpop.xlane.xlu0 %644
      %v646 = vmax.f32 %v600, 1e-24
      %v647 = vmax.f32 %v603, 1e-24
      %v648 = vmax.f32 %v606, 1e-24
      %v649 = vmax.f32 %v609, 1e-24
      %v650 = vmax.f32 %v612, 1e-24
      %v651 = vmax.f32 %v615, 1e-24
      %v652 = vmax.f32 %v618, 1e-24
      %v653 = vmax.f32 %v621, 1e-24
      %v654 = vmax.f32 %v624, 1e-24
      %v655 = vmax.f32 %v627, 1e-24
      %v656 = vmax.f32 %v630, 1e-24
      %v657 = vmax.f32 %v633, 1e-24
      %v658 = vmax.f32 %v636, 1e-24
      %v659 = vmax.f32 %v639, 1e-24
      %v660 = vmax.f32 %v642, 1e-24
      %v661 = vmax.f32 %v645, 1e-24
      %v662 = vrsqrt.pop %v646
      %v663 = vrsqrt.pop %v647
      %v664 = vrsqrt.pop %v648
      %v665 = vrsqrt.pop %v649
      %v666 = vrsqrt.pop %v650
      %v667 = vrsqrt.pop %v651
      %v668 = vrsqrt.pop %v652
      %v669 = vrsqrt.pop %v653
      %v670 = vrsqrt.pop %v654
      %v671 = vrsqrt.pop %v655
      %v672 = vrsqrt.pop %v656
      %v673 = vrsqrt.pop %v657
      %v674 = vrsqrt.pop %v658
      %v675 = vrsqrt.pop %v659
      %v676 = vrsqrt.pop %v660
      %v677 = vrsqrt.pop %v661
      %v678 = vmul.f32 %v565, %v662
      %v679 = vmul.f32 %v566, %v663
      %v680 = vmul.f32 %v567, %v664
      %v681 = vmul.f32 %v568, %v665
      %v682 = vmul.f32 %v569, %v666
      %v683 = vmul.f32 %v570, %v667
      %v684 = vmul.f32 %v571, %v668
      %v685 = vmul.f32 %v572, %v669
      %v686 = vmul.f32 %v573, %v670
      %v687 = vmul.f32 %v574, %v671
      %v688 = vmul.f32 %v575, %v672
      %v689 = vmul.f32 %v576, %v673
      %v690 = vmul.f32 %v577, %v674
      %v691 = vmul.f32 %v578, %v675
      %v692 = vmul.f32 %v579, %v676
      %v693 = vmul.f32 %v580, %v677
      %v694 = vld [vmem:[#allocation2] sm:$0xff]
      %v695 = vld [vmem:[#allocation2 + $0x8] sm:$0xff]
      %v696 = vld [vmem:[#allocation2 + $0x10] sm:$0xff]
      %v697 = vld [vmem:[#allocation2 + $0x18] sm:$0xff]
      %v698 = vld [vmem:[#allocation2 + $0x20] sm:$0xff]
      %v699 = vld [vmem:[#allocation2 + $0x28] sm:$0xff]
      %v700 = vld [vmem:[#allocation2 + $0x30] sm:$0xff]
      %v701 = vld [vmem:[#allocation2 + $0x38] sm:$0xff]
      %v702 = vld [vmem:[#allocation2 + $0x40] sm:$0xff]
      %v703 = vld [vmem:[#allocation2 + $0x48] sm:$0xff]
      %v704 = vld [vmem:[#allocation2 + $0x50] sm:$0xff]
      %v705 = vld [vmem:[#allocation2 + $0x58] sm:$0xff]
      %v706 = vld [vmem:[#allocation2 + $0x60] sm:$0xff]
      %v707 = vld [vmem:[#allocation2 + $0x68] sm:$0xff]
      %v708 = vld [vmem:[#allocation2 + $0x70] sm:$0xff]
      %v709 = vld [vmem:[#allocation2 + $0x78] sm:$0xff]
      %v711 = vsel %vm597, %v694, 0
      %v714 = vsel %vm597, %v695, 0
      %v717 = vsel %vm597, %v696, 0
      %v720 = vsel %vm597, %v697, 0
      %v723 = vsel %vm597, %v698, 0
      %v726 = vsel %vm597, %v699, 0
      %v729 = vsel %vm597, %v700, 0
      %v732 = vsel %vm597, %v701, 0
      %v735 = vsel %vm597, %v702, 0
      %v738 = vsel %vm597, %v703, 0
      %v741 = vsel %vm597, %v704, 0
      %v744 = vsel %vm597, %v705, 0
      %v747 = vsel %vm597, %v706, 0
      %v750 = vsel %vm597, %v707, 0
      %v753 = vsel %vm597, %v708, 0
      %v756 = vsel %vm597, %v709, 0
      %v759 = vsel %vm597, %v678, 0
      %v762 = vsel %vm597, %v679, 0
      %v765 = vsel %vm597, %v680, 0
      %v768 = vsel %vm597, %v681, 0
      %v771 = vsel %vm597, %v682, 0
      %v774 = vsel %vm597, %v683, 0
      %v777 = vsel %vm597, %v684, 0
      %v780 = vsel %vm597, %v685, 0
      %v783 = vsel %vm597, %v686, 0
      %v786 = vsel %vm597, %v687, 0
      %v789 = vsel %vm597, %v688, 0
      %v792 = vsel %vm597, %v689, 0
      %v795 = vsel %vm597, %v690, 0
      %v798 = vsel %vm597, %v691, 0
      %v801 = vsel %vm597, %v692, 0
      %v804 = vsel %vm597, %v693, 0
      %806 = vmatprep.subr.mxu0 0.0
      %807 = vmatpush1.xpose.msra.mxu0 %v759
      %808 = vmatprep.subr.mxu0 0.0
      %809 = vmatpush1.xpose.msra.mxu0 %v762
      %810 = vmatprep.subr.mxu0 0.0
      %811 = vmatpush1.xpose.msra.mxu0 %v765
      %812 = vmatprep.subr.mxu0 0.0
      %813 = vmatpush1.xpose.msra.mxu0 %v768
      %814 = vmatprep.subr.mxu0 0.0
      %815 = vmatpush1.xpose.msra.mxu0 %v771
      %816 = vmatprep.subr.mxu0 0.0
      %817 = vmatpush1.xpose.msra.mxu0 %v774
      %818 = vmatprep.subr.mxu0 0.0
      %819 = vmatpush1.xpose.msra.mxu0 %v777
      %820 = vmatprep.subr.mxu0 0.0
      %821 = vmatpush1.xpose.msra.mxu0 %v780
      %822 = vmatprep.subr.mxu0 0.0
      %823 = vmatpush1.xpose.msra.mxu0 %v783
      %824 = vmatprep.subr.mxu0 0.0
      %825 = vmatpush1.xpose.msra.mxu0 %v786
      %826 = vmatprep.subr.mxu0 0.0
      %827 = vmatpush1.xpose.msra.mxu0 %v789
      %828 = vmatprep.subr.mxu0 0.0
      %829 = vmatpush1.xpose.msra.mxu0 %v792
      %830 = vmatprep.subr.mxu0 0.0
      %831 = vmatpush1.xpose.msra.mxu0 %v795
      %832 = vmatprep.subr.mxu0 0.0
      %833 = vmatpush1.xpose.msra.mxu0 %v798
      %834 = vmatprep.subr.mxu0 0.0
      %835 = vmatpush1.xpose.msra.mxu0 %v801
      %836 = vmatprep.subr.mxu0 0.0
      %837 = vmatpush1.xpose.msra.mxu0 %v804
      %838 = vmatprep.subr.mxu0 0.0
      %839 = vmatpush1.xpose.msra.mxu0 0.0
      %840 = vmatprep.subr.mxu0 0.0
      %841 = vmatpush1.xpose.msra.mxu0 0.0
      %842 = vmatprep.subr.mxu0 0.0
      %843 = vmatpush1.xpose.msra.mxu0 0.0
      %844 = vmatprep.subr.mxu0 0.0
      %845 = vmatpush1.xpose.msra.mxu0 0.0
      %846 = vmatprep.subr.mxu0 0.0
      %847 = vmatpush1.xpose.msra.mxu0 0.0
      %848 = vmatprep.subr.mxu0 0.0
      %849 = vmatpush1.xpose.msra.mxu0 0.0
      %850 = vmatprep.subr.mxu0 0.0
      %851 = vmatpush1.xpose.msra.mxu0 0.0
      %852 = vmatprep.subr.mxu0 0.0
      %853 = vmatpush1.xpose.msra.mxu0 0.0
      %854 = vmatprep.subr.mxu0 0.0
      %855 = vmatpush1.xpose.msra.mxu0 0.0
      %856 = vmatprep.subr.mxu0 0.0
      %857 = vmatpush1.xpose.msra.mxu0 0.0
      %858 = vmatprep.subr.mxu0 0.0
      %859 = vmatpush1.xpose.msra.mxu0 0.0
      %860 = vmatprep.subr.mxu0 0.0
      %861 = vmatpush1.xpose.msra.mxu0 0.0
      %862 = vmatprep.subr.mxu0 0.0
      %863 = vmatpush1.xpose.msra.mxu0 0.0
      %864 = vmatprep.subr.mxu0 0.0
      %865 = vmatpush1.xpose.msra.mxu0 0.0
      %866 = vmatprep.subr.mxu0 0.0
      %867 = vmatpush1.xpose.msra.mxu0 0.0
      %868 = vmatprep.subr.mxu0 0.0
      %869 = vmatpush1.xpose.msra.mxu0 0.0
      %870 = vmatprep.mubr.f32.mxu0 0.0
      %871 = vmatmul.mubr.f32.gmra.mrb[0].mxu0 %v711
      %v872 = vpop.f32.mrb[0].mxu0
      %v873 = vadd.f32 0.0, %v872
      %v874 = vpop.f32.mrb[0].mxu0
      %875 = vmatprep.mubr.f32.mxu0 0.0
      %876 = vmatmul.mubr.f32.gmra.mrb[0].mxu0 %v714
      %v877 = vpop.f32.mrb[0].mxu0
      %v878 = vadd.f32 0.0, %v877
      %v879 = vpop.f32.mrb[0].mxu0
      %880 = vmatprep.mubr.f32.mxu0 0.0
      %881 = vmatmul.mubr.f32.gmra.mrb[0].mxu0 %v717
      %v882 = vpop.f32.mrb[0].mxu0
      %v883 = vadd.f32 0.0, %v882
      %v884 = vpop.f32.mrb[0].mxu0
      %885 = vmatprep.mubr.f32.mxu0 0.0
      %886 = vmatmul.mubr.f32.gmra.mrb[0].mxu0 %v720
      %v887 = vpop.f32.mrb[0].mxu0
      %v888 = vadd.f32 0.0, %v887
      %v889 = vpop.f32.mrb[0].mxu0
      %890 = vmatprep.mubr.f32.mxu0 0.0
      %891 = vmatmul.mubr.f32.gmra.mrb[0].mxu0 %v723
      %v892 = vpop.f32.mrb[0].mxu0
      %v893 = vadd.f32 0.0, %v892
      %v894 = vpop.f32.mrb[0].mxu0
      %895 = vmatprep.mubr.f32.mxu0 0.0
      %896 = vmatmul.mubr.f32.gmra.mrb[0].mxu0 %v726
      %v897 = vpop.f32.mrb[0].mxu0
      %v898 = vadd.f32 0.0, %v897
      %v899 = vpop.f32.mrb[0].mxu0
      %900 = vmatprep.mubr.f32.mxu0 0.0
      %901 = vmatmul.mubr.f32.gmra.mrb[0].mxu0 %v729
      %v902 = vpop.f32.mrb[0].mxu0
      %v903 = vadd.f32 0.0, %v902
      %v904 = vpop.f32.mrb[0].mxu0
      %905 = vmatprep.mubr.f32.mxu0 0.0
      %906 = vmatmul.mubr.f32.gmra.mrb[0].mxu0 %v732
      %v907 = vpop.f32.mrb[0].mxu0
      %v908 = vadd.f32 0.0, %v907
      %v909 = vpop.f32.mrb[0].mxu0
      %910 = vmatprep.mubr.f32.mxu0 0.0
      %911 = vmatmul.mubr.f32.gmra.mrb[0].mxu0 %v735
      %v912 = vpop.f32.mrb[0].mxu0
      %v913 = vadd.f32 0.0, %v912
      %v914 = vpop.f32.mrb[0].mxu0
      %915 = vmatprep.mubr.f32.mxu0 0.0
      %916 = vmatmul.mubr.f32.gmra.mrb[0].mxu0 %v738
      %v917 = vpop.f32.mrb[0].mxu0
      %v918 = vadd.f32 0.0, %v917
      %v919 = vpop.f32.mrb[0].mxu0
      %920 = vmatprep.mubr.f32.mxu0 0.0
      %921 = vmatmul.mubr.f32.gmra.mrb[0].mxu0 %v741
      %v922 = vpop.f32.mrb[0].mxu0
      %v923 = vadd.f32 0.0, %v922
      %v924 = vpop.f32.mrb[0].mxu0
      %925 = vmatprep.mubr.f32.mxu0 0.0
      %926 = vmatmul.mubr.f32.gmra.mrb[0].mxu0 %v744
      %v927 = vpop.f32.mrb[0].mxu0
      %v928 = vadd.f32 0.0, %v927
      %v929 = vpop.f32.mrb[0].mxu0
      %930 = vmatprep.mubr.f32.mxu0 0.0
      %931 = vmatmul.mubr.f32.gmra.mrb[0].mxu0 %v747
      %v932 = vpop.f32.mrb[0].mxu0
      %v933 = vadd.f32 0.0, %v932
      %v934 = vpop.f32.mrb[0].mxu0
      %935 = vmatprep.mubr.f32.mxu0 0.0
      %936 = vmatmul.mubr.f32.gmra.mrb[0].mxu0 %v750
      %v937 = vpop.f32.mrb[0].mxu0
      %v938 = vadd.f32 0.0, %v937
      %v939 = vpop.f32.mrb[0].mxu0
      %940 = vmatprep.mubr.f32.mxu0 0.0
      %941 = vmatmul.mubr.f32.gmra.mrb[0].mxu0 %v753
      %v942 = vpop.f32.mrb[0].mxu0
      %v943 = vadd.f32 0.0, %v942
      %v944 = vpop.f32.mrb[0].mxu0
      %945 = vmatprep.mubr.f32.mxu0 0.0
      %946 = vmatmul.mubr.f32.gmra.mrb[0].mxu0 %v756
      %v947 = vpop.f32.mrb[0].mxu0
      %v948 = vadd.f32 0.0, %v947
      %v949 = vpop.f32.mrb[0].mxu0
      %950 = vdwg.mxu0
      %v951 = vld [vmem:[#allocation4] sm:$0xff]
      %v952 = vld [vmem:[#allocation4 + $0x8] sm:$0xff]
      %v953 = vld [vmem:[#allocation4 + $0x10] sm:$0xff]
      %v954 = vld [vmem:[#allocation4 + $0x18] sm:$0xff]
      %v955 = vld [vmem:[#allocation4 + $0x20] sm:$0xff]
      %v956 = vld [vmem:[#allocation4 + $0x28] sm:$0xff]
      %v957 = vld [vmem:[#allocation4 + $0x30] sm:$0xff]
      %v958 = vld [vmem:[#allocation4 + $0x38] sm:$0xff]
      %v959 = vld [vmem:[#allocation4 + $0x40] sm:$0xff]
      %v960 = vld [vmem:[#allocation4 + $0x48] sm:$0xff]
      %v961 = vld [vmem:[#allocation4 + $0x50] sm:$0xff]
      %v962 = vld [vmem:[#allocation4 + $0x58] sm:$0xff]
      %v963 = vld [vmem:[#allocation4 + $0x60] sm:$0xff]
      %v964 = vld [vmem:[#allocation4 + $0x68] sm:$0xff]
      %v965 = vld [vmem:[#allocation4 + $0x70] sm:$0xff]
      %v966 = vld [vmem:[#allocation4 + $0x78] sm:$0xff]
      %967 = vmax.xlane.f32.xlu0 %v873
      %v968 = vpop.xlane.xlu0 %967
      %969 = vmax.xlane.f32.xlu0 %v878
      %v970 = vpop.xlane.xlu0 %969
      %971 = vmax.xlane.f32.xlu0 %v883
      %v972 = vpop.xlane.xlu0 %971
      %973 = vmax.xlane.f32.xlu0 %v888
      %v974 = vpop.xlane.xlu0 %973
      %975 = vmax.xlane.f32.xlu0 %v893
      %v976 = vpop.xlane.xlu0 %975
      %977 = vmax.xlane.f32.xlu0 %v898
      %v978 = vpop.xlane.xlu0 %977
      %979 = vmax.xlane.f32.xlu0 %v903
      %v980 = vpop.xlane.xlu0 %979
      %981 = vmax.xlane.f32.xlu0 %v908
      %v982 = vpop.xlane.xlu0 %981
      %983 = vmax.xlane.f32.xlu0 %v913
      %v984 = vpop.xlane.xlu0 %983
      %985 = vmax.xlane.f32.xlu0 %v918
      %v986 = vpop.xlane.xlu0 %985
      %987 = vmax.xlane.f32.xlu0 %v923
      %v988 = vpop.xlane.xlu0 %987
      %989 = vmax.xlane.f32.xlu0 %v928
      %v990 = vpop.xlane.xlu0 %989
      %991 = vmax.xlane.f32.xlu0 %v933
      %v992 = vpop.xlane.xlu0 %991
      %993 = vmax.xlane.f32.xlu0 %v938
      %v994 = vpop.xlane.xlu0 %993
      %995 = vmax.xlane.f32.xlu0 %v943
      %v996 = vpop.xlane.xlu0 %995
      %997 = vmax.xlane.f32.xlu0 %v948
      %v998 = vpop.xlane.xlu0 %997
      %v999 = vmax.f32 %v951, %v968
      %v1000 = vmax.f32 %v952, %v970
      %v1001 = vmax.f32 %v953, %v972
      %v1002 = vmax.f32 %v954, %v974
      %v1003 = vmax.f32 %v955, %v976
      %v1004 = vmax.f32 %v956, %v978
      %v1005 = vmax.f32 %v957, %v980
      %v1006 = vmax.f32 %v958, %v982
      %v1007 = vmax.f32 %v959, %v984
      %v1008 = vmax.f32 %v960, %v986
      %v1009 = vmax.f32 %v961, %v988
      %v1010 = vmax.f32 %v962, %v990
      %v1011 = vmax.f32 %v963, %v992
      %v1012 = vmax.f32 %v964, %v994
      %v1013 = vmax.f32 %v965, %v996
      %v1014 = vmax.f32 %v966, %v998
      %v1015 = vld [vmem:[#allocation5] sm:$0xff]
      %v1016 = vld [vmem:[#allocation5 + $0x8] sm:$0xff]
      %v1017 = vld [vmem:[#allocation5 + $0x10] sm:$0xff]
      %v1018 = vld [vmem:[#allocation5 + $0x18] sm:$0xff]
      %v1019 = vld [vmem:[#allocation5 + $0x20] sm:$0xff]
      %v1020 = vld [vmem:[#allocation5 + $0x28] sm:$0xff]
      %v1021 = vld [vmem:[#allocation5 + $0x30] sm:$0xff]
      %v1022 = vld [vmem:[#allocation5 + $0x38] sm:$0xff]
      %v1023 = vld [vmem:[#allocation5 + $0x40] sm:$0xff]
      %v1024 = vld [vmem:[#allocation5 + $0x48] sm:$0xff]
      %v1025 = vld [vmem:[#allocation5 + $0x50] sm:$0xff]
      %v1026 = vld [vmem:[#allocation5 + $0x58] sm:$0xff]
      %v1027 = vld [vmem:[#allocation5 + $0x60] sm:$0xff]
      %v1028 = vld [vmem:[#allocation5 + $0x68] sm:$0xff]
      %v1029 = vld [vmem:[#allocation5 + $0x70] sm:$0xff]
      %v1030 = vld [vmem:[#allocation5 + $0x78] sm:$0xff]
      %v1031 = vsub.f32 %v951, %v999
      %v1032 = vsub.f32 %v952, %v1000
      %v1033 = vsub.f32 %v953, %v1001
      %v1034 = vsub.f32 %v954, %v1002
      %v1035 = vsub.f32 %v955, %v1003
      %v1036 = vsub.f32 %v956, %v1004
      %v1037 = vsub.f32 %v957, %v1005
      %v1038 = vsub.f32 %v958, %v1006
      %v1039 = vsub.f32 %v959, %v1007
      %v1040 = vsub.f32 %v960, %v1008
      %v1041 = vsub.f32 %v961, %v1009
      %v1042 = vsub.f32 %v962, %v1010
      %v1043 = vsub.f32 %v963, %v1011
      %v1044 = vsub.f32 %v964, %v1012
      %v1045 = vsub.f32 %v965, %v1013
      %v1046 = vsub.f32 %v966, %v1014
      %v1047 = vmul.f32 %v1031, 1.442695
      %v1048 = vpow.pop %v1047
      %v1049 = vmul.f32 %v1032, 1.442695
      %v1050 = vpow.pop %v1049
      %v1051 = vmul.f32 %v1033, 1.442695
      %v1052 = vpow.pop %v1051
      %v1053 = vmul.f32 %v1034, 1.442695
      %v1054 = vpow.pop %v1053
      %v1055 = vmul.f32 %v1035, 1.442695
      %v1056 = vpow.pop %v1055
      %v1057 = vmul.f32 %v1036, 1.442695
      %v1058 = vpow.pop %v1057
      %v1059 = vmul.f32 %v1037, 1.442695
      %v1060 = vpow.pop %v1059
      %v1061 = vmul.f32 %v1038, 1.442695
      %v1062 = vpow.pop %v1061
      %v1063 = vmul.f32 %v1039, 1.442695
      %v1064 = vpow.pop %v1063
      %v1065 = vmul.f32 %v1040, 1.442695
      %v1066 = vpow.pop %v1065
      %v1067 = vmul.f32 %v1041, 1.442695
      %v1068 = vpow.pop %v1067
      %v1069 = vmul.f32 %v1042, 1.442695
      %v1070 = vpow.pop %v1069
      %v1071 = vmul.f32 %v1043, 1.442695
      %v1072 = vpow.pop %v1071
      %v1073 = vmul.f32 %v1044, 1.442695
      %v1074 = vpow.pop %v1073
      %v1075 = vmul.f32 %v1045, 1.442695
      %v1076 = vpow.pop %v1075
      %v1077 = vmul.f32 %v1046, 1.442695
      %v1078 = vpow.pop %v1077
      %v1079 = vmul.f32 %v1015, %v1048
      %v1080 = vmul.f32 %v1016, %v1050
      %v1081 = vmul.f32 %v1017, %v1052
      %v1082 = vmul.f32 %v1018, %v1054
      %v1083 = vmul.f32 %v1019, %v1056
      %v1084 = vmul.f32 %v1020, %v1058
      %v1085 = vmul.f32 %v1021, %v1060
      %v1086 = vmul.f32 %v1022, %v1062
      %v1087 = vmul.f32 %v1023, %v1064
      %v1088 = vmul.f32 %v1024, %v1066
      %v1089 = vmul.f32 %v1025, %v1068
      %v1090 = vmul.f32 %v1026, %v1070
      %v1091 = vmul.f32 %v1027, %v1072
      %v1092 = vmul.f32 %v1028, %v1074
      %v1093 = vmul.f32 %v1029, %v1076
      %v1094 = vmul.f32 %v1030, %v1078
      %1096 = vset.pattern.permute.xlu0 0
      %1097 = vperm.xlu0 %1096, %v999
      %v1098 = vpop.permute.xlu0 %1097
      %1101 = vset.pattern.permute.xlu0 0
      %1102 = vperm.xlu0 %1101, %v1000
      %v1103 = vpop.permute.xlu0 %1102
      %1106 = vset.pattern.permute.xlu0 0
      %1107 = vperm.xlu0 %1106, %v1001
      %v1108 = vpop.permute.xlu0 %1107
      %1111 = vset.pattern.permute.xlu0 0
      %1112 = vperm.xlu0 %1111, %v1002
      %v1113 = vpop.permute.xlu0 %1112
      %1116 = vset.pattern.permute.xlu0 0
      %1117 = vperm.xlu0 %1116, %v1003
      %v1118 = vpop.permute.xlu0 %1117
      %1121 = vset.pattern.permute.xlu0 0
      %1122 = vperm.xlu0 %1121, %v1004
      %v1123 = vpop.permute.xlu0 %1122
      %1126 = vset.pattern.permute.xlu0 0
      %1127 = vperm.xlu0 %1126, %v1005
      %v1128 = vpop.permute.xlu0 %1127
      %1131 = vset.pattern.permute.xlu0 0
      %1132 = vperm.xlu0 %1131, %v1006
      %v1133 = vpop.permute.xlu0 %1132
      %1136 = vset.pattern.permute.xlu0 0
      %1137 = vperm.xlu0 %1136, %v1007
      %v1138 = vpop.permute.xlu0 %1137
      %1141 = vset.pattern.permute.xlu0 0
      %1142 = vperm.xlu0 %1141, %v1008
      %v1143 = vpop.permute.xlu0 %1142
      %1146 = vset.pattern.permute.xlu0 0
      %1147 = vperm.xlu0 %1146, %v1009
      %v1148 = vpop.permute.xlu0 %1147
      %1151 = vset.pattern.permute.xlu0 0
      %1152 = vperm.xlu0 %1151, %v1010
      %v1153 = vpop.permute.xlu0 %1152
      %1156 = vset.pattern.permute.xlu0 0
      %1157 = vperm.xlu0 %1156, %v1011
      %v1158 = vpop.permute.xlu0 %1157
      %1161 = vset.pattern.permute.xlu0 0
      %1162 = vperm.xlu0 %1161, %v1012
      %v1163 = vpop.permute.xlu0 %1162
      %1166 = vset.pattern.permute.xlu0 0
      %1167 = vperm.xlu0 %1166, %v1013
      %v1168 = vpop.permute.xlu0 %1167
      %1171 = vset.pattern.permute.xlu0 0
      %1172 = vperm.xlu0 %1171, %v1014
      %v1173 = vpop.permute.xlu0 %1172
      %v1175 = vsub.f32 %v873, %v1098
      %v1176 = vsub.f32 %v878, %v1103
      %v1177 = vsub.f32 %v883, %v1108
      %v1178 = vsub.f32 %v888, %v1113
      %v1179 = vsub.f32 %v893, %v1118
      %v1180 = vsub.f32 %v898, %v1123
      %v1181 = vsub.f32 %v903, %v1128
      %v1182 = vsub.f32 %v908, %v1133
      %v1183 = vsub.f32 %v913, %v1138
      %v1184 = vsub.f32 %v918, %v1143
      %v1185 = vsub.f32 %v923, %v1148
      %v1186 = vsub.f32 %v928, %v1153
      %v1187 = vsub.f32 %v933, %v1158
      %v1188 = vsub.f32 %v938, %v1163
      %v1189 = vsub.f32 %v943, %v1168
      %v1190 = vsub.f32 %v948, %v1173
      %v1191 = vmul.f32 %v1175, 1.442695
      %v1192 = vpow.pop %v1191
      %v1193 = vmul.f32 %v1176, 1.442695
      %v1194 = vpow.pop %v1193
      %v1195 = vmul.f32 %v1177, 1.442695
      %v1196 = vpow.pop %v1195
      %v1197 = vmul.f32 %v1178, 1.442695
      %v1198 = vpow.pop %v1197
      %v1199 = vmul.f32 %v1179, 1.442695
      %v1200 = vpow.pop %v1199
      %v1201 = vmul.f32 %v1180, 1.442695
      %v1202 = vpow.pop %v1201
      %v1203 = vmul.f32 %v1181, 1.442695
      %v1204 = vpow.pop %v1203
      %v1205 = vmul.f32 %v1182, 1.442695
      %v1206 = vpow.pop %v1205
      %v1207 = vmul.f32 %v1183, 1.442695
      %v1208 = vpow.pop %v1207
      %v1209 = vmul.f32 %v1184, 1.442695
      %v1210 = vpow.pop %v1209
      %v1211 = vmul.f32 %v1185, 1.442695
      %v1212 = vpow.pop %v1211
      %v1213 = vmul.f32 %v1186, 1.442695
      %v1214 = vpow.pop %v1213
      %v1215 = vmul.f32 %v1187, 1.442695
      %v1216 = vpow.pop %v1215
      %v1217 = vmul.f32 %v1188, 1.442695
      %v1218 = vpow.pop %v1217
      %v1219 = vmul.f32 %v1189, 1.442695
      %v1220 = vpow.pop %v1219
      %v1221 = vmul.f32 %v1190, 1.442695
      %v1222 = vpow.pop %v1221
      %1223 = vadd.xlane.f32.xlu0 %v1192
      %v1224 = vpop.xlane.xlu0 %1223
      %1225 = vadd.xlane.f32.xlu0 %v1194
      %v1226 = vpop.xlane.xlu0 %1225
      %1227 = vadd.xlane.f32.xlu0 %v1196
      %v1228 = vpop.xlane.xlu0 %1227
      %1229 = vadd.xlane.f32.xlu0 %v1198
      %v1230 = vpop.xlane.xlu0 %1229
      %1231 = vadd.xlane.f32.xlu0 %v1200
      %v1232 = vpop.xlane.xlu0 %1231
      %1233 = vadd.xlane.f32.xlu0 %v1202
      %v1234 = vpop.xlane.xlu0 %1233
      %1235 = vadd.xlane.f32.xlu0 %v1204
      %v1236 = vpop.xlane.xlu0 %1235
      %1237 = vadd.xlane.f32.xlu0 %v1206
      %v1238 = vpop.xlane.xlu0 %1237
      %1239 = vadd.xlane.f32.xlu0 %v1208
      %v1240 = vpop.xlane.xlu0 %1239
      %1241 = vadd.xlane.f32.xlu0 %v1210
      %v1242 = vpop.xlane.xlu0 %1241
      %1243 = vadd.xlane.f32.xlu0 %v1212
      %v1244 = vpop.xlane.xlu0 %1243
      %1245 = vadd.xlane.f32.xlu0 %v1214
      %v1246 = vpop.xlane.xlu0 %1245
      %1247 = vadd.xlane.f32.xlu0 %v1216
      %v1248 = vpop.xlane.xlu0 %1247
      %1249 = vadd.xlane.f32.xlu0 %v1218
      %v1250 = vpop.xlane.xlu0 %1249
      %1251 = vadd.xlane.f32.xlu0 %v1220
      %v1252 = vpop.xlane.xlu0 %1251
      %1253 = vadd.xlane.f32.xlu0 %v1222
      %v1254 = vpop.xlane.xlu0 %1253
      %v1255 = vadd.f32 %v1079, %v1224
      %v1256 = vadd.f32 %v1080, %v1226
      %v1257 = vadd.f32 %v1081, %v1228
      %v1258 = vadd.f32 %v1082, %v1230
      %v1259 = vadd.f32 %v1083, %v1232
      %v1260 = vadd.f32 %v1084, %v1234
      %v1261 = vadd.f32 %v1085, %v1236
      %v1262 = vadd.f32 %v1086, %v1238
      %v1263 = vadd.f32 %v1087, %v1240
      %v1264 = vadd.f32 %v1088, %v1242
      %v1265 = vadd.f32 %v1089, %v1244
      %v1266 = vadd.f32 %v1090, %v1246
      %v1267 = vadd.f32 %v1091, %v1248
      %v1268 = vadd.f32 %v1092, %v1250
      %v1269 = vadd.f32 %v1093, %v1252
      %v1270 = vadd.f32 %v1094, %v1254
      %vm1271 = vcmask 7168
      %1272 = vst.msk [vmem:[#allocation5] sm:$0xff] %vm1271, %v1255
      %1273 = vst.msk [vmem:[#allocation5 + $0x8] sm:$0xff] %vm1271, %v1256
      %1274 = vst.msk [vmem:[#allocation5 + $0x10] sm:$0xff] %vm1271, %v1257
      %1275 = vst.msk [vmem:[#allocation5 + $0x18] sm:$0xff] %vm1271, %v1258
      %1276 = vst.msk [vmem:[#allocation5 + $0x20] sm:$0xff] %vm1271, %v1259
      %1277 = vst.msk [vmem:[#allocation5 + $0x28] sm:$0xff] %vm1271, %v1260
      %1278 = vst.msk [vmem:[#allocation5 + $0x30] sm:$0xff] %vm1271, %v1261
      %1279 = vst.msk [vmem:[#allocation5 + $0x38] sm:$0xff] %vm1271, %v1262
      %1280 = vst.msk [vmem:[#allocation5 + $0x40] sm:$0xff] %vm1271, %v1263
      %1281 = vst.msk [vmem:[#allocation5 + $0x48] sm:$0xff] %vm1271, %v1264
      %1282 = vst.msk [vmem:[#allocation5 + $0x50] sm:$0xff] %vm1271, %v1265
      %1283 = vst.msk [vmem:[#allocation5 + $0x58] sm:$0xff] %vm1271, %v1266
      %1284 = vst.msk [vmem:[#allocation5 + $0x60] sm:$0xff] %vm1271, %v1267
      %1285 = vst.msk [vmem:[#allocation5 + $0x68] sm:$0xff] %vm1271, %v1268
      %1286 = vst.msk [vmem:[#allocation5 + $0x70] sm:$0xff] %vm1271, %v1269
      %1287 = vst.msk [vmem:[#allocation5 + $0x78] sm:$0xff] %vm1271, %v1270
      %1288 = vst.msk [vmem:[#allocation4] sm:$0xff] %vm1271, %v999
      %1289 = vst.msk [vmem:[#allocation4 + $0x8] sm:$0xff] %vm1271, %v1000
      %1290 = vst.msk [vmem:[#allocation4 + $0x10] sm:$0xff] %vm1271, %v1001
      %1291 = vst.msk [vmem:[#allocation4 + $0x18] sm:$0xff] %vm1271, %v1002
      %1292 = vst.msk [vmem:[#allocation4 + $0x20] sm:$0xff] %vm1271, %v1003
      %1293 = vst.msk [vmem:[#allocation4 + $0x28] sm:$0xff] %vm1271, %v1004
      %1294 = vst.msk [vmem:[#allocation4 + $0x30] sm:$0xff] %vm1271, %v1005
      %1295 = vst.msk [vmem:[#allocation4 + $0x38] sm:$0xff] %vm1271, %v1006
      %1296 = vst.msk [vmem:[#allocation4 + $0x40] sm:$0xff] %vm1271, %v1007
      %1297 = vst.msk [vmem:[#allocation4 + $0x48] sm:$0xff] %vm1271, %v1008
      %1298 = vst.msk [vmem:[#allocation4 + $0x50] sm:$0xff] %vm1271, %v1009
      %1299 = vst.msk [vmem:[#allocation4 + $0x58] sm:$0xff] %vm1271, %v1010
      %1300 = vst.msk [vmem:[#allocation4 + $0x60] sm:$0xff] %vm1271, %v1011
      %1301 = vst.msk [vmem:[#allocation4 + $0x68] sm:$0xff] %vm1271, %v1012
      %1302 = vst.msk [vmem:[#allocation4 + $0x70] sm:$0xff] %vm1271, %v1013
      %1303 = vst.msk [vmem:[#allocation4 + $0x78] sm:$0xff] %vm1271, %v1014
      %v1304 = vld [vmem:[%s260] sm:$0xff]
      %v1305 = vld [vmem:[%s260 + $0x8] sm:$0xff]
      %v1306 = vld [vmem:[%s260 + $0x10] sm:$0xff]
      %v1307 = vld [vmem:[%s260 + $0x18] sm:$0xff]
      %v1308 = vld [vmem:[%s260 + $0x20] sm:$0xff]
      %v1309 = vld [vmem:[%s260 + $0x28] sm:$0xff]
      %v1310 = vld [vmem:[%s260 + $0x30] sm:$0xff]
      %v1311 = vld [vmem:[%s260 + $0x38] sm:$0xff]
      %v1312 = vld [vmem:[%s260 + $0x40] sm:$0xff]
      %v1313 = vld [vmem:[%s260 + $0x48] sm:$0xff]
      %v1314 = vld [vmem:[%s260 + $0x50] sm:$0xff]
      %v1315 = vld [vmem:[%s260 + $0x58] sm:$0xff]
      %v1316 = vld [vmem:[%s260 + $0x60] sm:$0xff]
      %v1317 = vld [vmem:[%s260 + $0x68] sm:$0xff]
      %v1318 = vld [vmem:[%s260 + $0x70] sm:$0xff]
      %v1319 = vld [vmem:[%s260 + $0x78] sm:$0xff]
      %v1320 = vld [vmem:[%s264] sm:$0x1]
      %1321 = vset.pattern.permute.xlu0 0
      %1322 = vperm.xlu0 %1321, %v1304
      %v1323 = vpop.permute.xlu0 %1322
      %1324 = vset.pattern.permute.xlu0 0
      %1325 = vperm.xlu0 %1324, %v1305
      %v1326 = vpop.permute.xlu0 %1325
      %1327 = vset.pattern.permute.xlu0 0
      %1328 = vperm.xlu0 %1327, %v1306
      %v1329 = vpop.permute.xlu0 %1328
      %1330 = vset.pattern.permute.xlu0 0
      %1331 = vperm.xlu0 %1330, %v1307
      %v1332 = vpop.permute.xlu0 %1331
      %1333 = vset.pattern.permute.xlu0 0
      %1334 = vperm.xlu0 %1333, %v1308
      %v1335 = vpop.permute.xlu0 %1334
      %1336 = vset.pattern.permute.xlu0 0
      %1337 = vperm.xlu0 %1336, %v1309
      %v1338 = vpop.permute.xlu0 %1337
      %1339 = vset.pattern.permute.xlu0 0
      %1340 = vperm.xlu0 %1339, %v1310
      %v1341 = vpop.permute.xlu0 %1340
      %1342 = vset.pattern.permute.xlu0 0
      %1343 = vperm.xlu0 %1342, %v1311
      %v1344 = vpop.permute.xlu0 %1343
      %1345 = vset.pattern.permute.xlu0 0
      %1346 = vperm.xlu0 %1345, %v1312
      %v1347 = vpop.permute.xlu0 %1346
      %1348 = vset.pattern.permute.xlu0 0
      %1349 = vperm.xlu0 %1348, %v1313
      %v1350 = vpop.permute.xlu0 %1349
      %1351 = vset.pattern.permute.xlu0 0
      %1352 = vperm.xlu0 %1351, %v1314
      %v1353 = vpop.permute.xlu0 %1352
      %1354 = vset.pattern.permute.xlu0 0
      %1355 = vperm.xlu0 %1354, %v1315
      %v1356 = vpop.permute.xlu0 %1355
      %1357 = vset.pattern.permute.xlu0 0
      %1358 = vperm.xlu0 %1357, %v1316
      %v1359 = vpop.permute.xlu0 %1358
      %1360 = vset.pattern.permute.xlu0 0
      %1361 = vperm.xlu0 %1360, %v1317
      %v1362 = vpop.permute.xlu0 %1361
      %1363 = vset.pattern.permute.xlu0 0
      %1364 = vperm.xlu0 %1363, %v1318
      %v1365 = vpop.permute.xlu0 %1364
      %1366 = vset.pattern.permute.xlu0 0
      %1367 = vperm.xlu0 %1366, %v1319
      %v1368 = vpop.permute.xlu0 %1367
      %v1369 = vlaneseq
      %v1370 = vshrl.u32 %v1369, 7
      %v1371 = vsub.s32 0, %v1370
      %v1372 = vrot.slane %v1320, %v1371
      %vm1373 = vcmp.eq.s32.totalorder %v1323, %v1372
      %vm1374 = vcmp.eq.s32.totalorder %v1326, %v1372
      %vm1375 = vcmp.eq.s32.totalorder %v1329, %v1372
      %vm1376 = vcmp.eq.s32.totalorder %v1332, %v1372
      %vm1377 = vcmp.eq.s32.totalorder %v1335, %v1372
      %vm1378 = vcmp.eq.s32.totalorder %v1338, %v1372
      %vm1379 = vcmp.eq.s32.totalorder %v1341, %v1372
      %vm1380 = vcmp.eq.s32.totalorder %v1344, %v1372
      %vm1381 = vcmp.eq.s32.totalorder %v1347, %v1372
      %vm1382 = vcmp.eq.s32.totalorder %v1350, %v1372
      %vm1383 = vcmp.eq.s32.totalorder %v1353, %v1372
      %vm1384 = vcmp.eq.s32.totalorder %v1356, %v1372
      %vm1385 = vcmp.eq.s32.totalorder %v1359, %v1372
      %vm1386 = vcmp.eq.s32.totalorder %v1362, %v1372
      %vm1387 = vcmp.eq.s32.totalorder %v1365, %v1372
      %vm1388 = vcmp.eq.s32.totalorder %v1368, %v1372
      %v1389 = vsel %vm1373, 1, 0
      %v1390 = vsel %vm1374, 1, 0
      %v1391 = vsel %vm1375, 1, 0
      %v1392 = vsel %vm1376, 1, 0
      %v1393 = vsel %vm1377, 1, 0
      %v1394 = vsel %vm1378, 1, 0
      %v1395 = vsel %vm1379, 1, 0
      %v1396 = vsel %vm1380, 1, 0
      %v1397 = vsel %vm1381, 1, 0
      %v1398 = vsel %vm1382, 1, 0
      %v1399 = vsel %vm1383, 1, 0
      %v1400 = vsel %vm1384, 1, 0
      %v1401 = vsel %vm1385, 1, 0
      %v1402 = vsel %vm1386, 1, 0
      %v1403 = vsel %vm1387, 1, 0
      %v1404 = vsel %vm1388, 1, 0
      %v1405 = vcvt.s32.f32 %v1389
      %v1406 = vcvt.s32.f32 %v1390
      %v1407 = vcvt.s32.f32 %v1391
      %v1408 = vcvt.s32.f32 %v1392
      %v1409 = vcvt.s32.f32 %v1393
      %v1410 = vcvt.s32.f32 %v1394
      %v1411 = vcvt.s32.f32 %v1395
      %v1412 = vcvt.s32.f32 %v1396
      %v1413 = vcvt.s32.f32 %v1397
      %v1414 = vcvt.s32.f32 %v1398
      %v1415 = vcvt.s32.f32 %v1399
      %v1416 = vcvt.s32.f32 %v1400
      %v1417 = vcvt.s32.f32 %v1401
      %v1418 = vcvt.s32.f32 %v1402
      %v1419 = vcvt.s32.f32 %v1403
      %v1420 = vcvt.s32.f32 %v1404
      %v1421 = vld [vmem:[#allocation6] sm:$0xff]
      %v1422 = vld [vmem:[#allocation6 + $0x8] sm:$0xff]
      %v1423 = vld [vmem:[#allocation6 + $0x10] sm:$0xff]
      %v1424 = vld [vmem:[#allocation6 + $0x18] sm:$0xff]
      %v1425 = vld [vmem:[#allocation6 + $0x20] sm:$0xff]
      %v1426 = vld [vmem:[#allocation6 + $0x28] sm:$0xff]
      %v1427 = vld [vmem:[#allocation6 + $0x30] sm:$0xff]
      %v1428 = vld [vmem:[#allocation6 + $0x38] sm:$0xff]
      %v1429 = vld [vmem:[#allocation6 + $0x40] sm:$0xff]
      %v1430 = vld [vmem:[#allocation6 + $0x48] sm:$0xff]
      %v1431 = vld [vmem:[#allocation6 + $0x50] sm:$0xff]
      %v1432 = vld [vmem:[#allocation6 + $0x58] sm:$0xff]
      %v1433 = vld [vmem:[#allocation6 + $0x60] sm:$0xff]
      %v1434 = vld [vmem:[#allocation6 + $0x68] sm:$0xff]
      %v1435 = vld [vmem:[#allocation6 + $0x70] sm:$0xff]
      %v1436 = vld [vmem:[#allocation6 + $0x78] sm:$0xff]
      %v1437 = vmul.f32 %v1405, %v873
      %v1438 = vmul.f32 %v1406, %v878
      %v1439 = vmul.f32 %v1407, %v883
      %v1440 = vmul.f32 %v1408, %v888
      %v1441 = vmul.f32 %v1409, %v893
      %v1442 = vmul.f32 %v1410, %v898
      %v1443 = vmul.f32 %v1411, %v903
      %v1444 = vmul.f32 %v1412, %v908
      %v1445 = vmul.f32 %v1413, %v913
      %v1446 = vmul.f32 %v1414, %v918
      %v1447 = vmul.f32 %v1415, %v923
      %v1448 = vmul.f32 %v1416, %v928
      %v1449 = vmul.f32 %v1417, %v933
      %v1450 = vmul.f32 %v1418, %v938
      %v1451 = vmul.f32 %v1419, %v943
      %v1452 = vmul.f32 %v1420, %v948
      %1453 = vadd.xlane.f32.xlu0 %v1437
      %v1454 = vpop.xlane.xlu0 %1453
      %1455 = vadd.xlane.f32.xlu0 %v1438
      %v1456 = vpop.xlane.xlu0 %1455
      %1457 = vadd.xlane.f32.xlu0 %v1439
      %v1458 = vpop.xlane.xlu0 %1457
      %1459 = vadd.xlane.f32.xlu0 %v1440
      %v1460 = vpop.xlane.xlu0 %1459
      %1461 = vadd.xlane.f32.xlu0 %v1441
      %v1462 = vpop.xlane.xlu0 %1461
      %1463 = vadd.xlane.f32.xlu0 %v1442
      %v1464 = vpop.xlane.xlu0 %1463
      %1465 = vadd.xlane.f32.xlu0 %v1443
      %v1466 = vpop.xlane.xlu0 %1465
      %1467 = vadd.xlane.f32.xlu0 %v1444
      %v1468 = vpop.xlane.xlu0 %1467
      %1469 = vadd.xlane.f32.xlu0 %v1445
      %v1470 = vpop.xlane.xlu0 %1469
      %1471 = vadd.xlane.f32.xlu0 %v1446
      %v1472 = vpop.xlane.xlu0 %1471
      %1473 = vadd.xlane.f32.xlu0 %v1447
      %v1474 = vpop.xlane.xlu0 %1473
      %1475 = vadd.xlane.f32.xlu0 %v1448
      %v1476 = vpop.xlane.xlu0 %1475
      %1477 = vadd.xlane.f32.xlu0 %v1449
      %v1478 = vpop.xlane.xlu0 %1477
      %1479 = vadd.xlane.f32.xlu0 %v1450
      %v1480 = vpop.xlane.xlu0 %1479
      %1481 = vadd.xlane.f32.xlu0 %v1451
      %v1482 = vpop.xlane.xlu0 %1481
      %1483 = vadd.xlane.f32.xlu0 %v1452
      %v1484 = vpop.xlane.xlu0 %1483
      %v1485 = vadd.f32 %v1421, %v1454
      %v1486 = vadd.f32 %v1422, %v1456
      %v1487 = vadd.f32 %v1423, %v1458
      %v1488 = vadd.f32 %v1424, %v1460
      %v1489 = vadd.f32 %v1425, %v1462
      %v1490 = vadd.f32 %v1426, %v1464
      %v1491 = vadd.f32 %v1427, %v1466
      %v1492 = vadd.f32 %v1428, %v1468
      %v1493 = vadd.f32 %v1429, %v1470
      %v1494 = vadd.f32 %v1430, %v1472
      %v1495 = vadd.f32 %v1431, %v1474
      %v1496 = vadd.f32 %v1432, %v1476
      %v1497 = vadd.f32 %v1433, %v1478
      %v1498 = vadd.f32 %v1434, %v1480
      %v1499 = vadd.f32 %v1435, %v1482
      %v1500 = vadd.f32 %v1436, %v1484
      %1501 = vst.msk [vmem:[#allocation6] sm:$0xff] %vm1271, %v1485
      %1502 = vst.msk [vmem:[#allocation6 + $0x8] sm:$0xff] %vm1271, %v1486
      %1503 = vst.msk [vmem:[#allocation6 + $0x10] sm:$0xff] %vm1271, %v1487
      %1504 = vst.msk [vmem:[#allocation6 + $0x18] sm:$0xff] %vm1271, %v1488
      %1505 = vst.msk [vmem:[#allocation6 + $0x20] sm:$0xff] %vm1271, %v1489
      %1506 = vst.msk [vmem:[#allocation6 + $0x28] sm:$0xff] %vm1271, %v1490
      %1507 = vst.msk [vmem:[#allocation6 + $0x30] sm:$0xff] %vm1271, %v1491
      %1508 = vst.msk [vmem:[#allocation6 + $0x38] sm:$0xff] %vm1271, %v1492
      %1509 = vst.msk [vmem:[#allocation6 + $0x40] sm:$0xff] %vm1271, %v1493
      %1510 = vst.msk [vmem:[#allocation6 + $0x48] sm:$0xff] %vm1271, %v1494
      %1511 = vst.msk [vmem:[#allocation6 + $0x50] sm:$0xff] %vm1271, %v1495
      %1512 = vst.msk [vmem:[#allocation6 + $0x58] sm:$0xff] %vm1271, %v1496
      %1513 = vst.msk [vmem:[#allocation6 + $0x60] sm:$0xff] %vm1271, %v1497
      %1514 = vst.msk [vmem:[#allocation6 + $0x68] sm:$0xff] %vm1271, %v1498
      %1515 = vst.msk [vmem:[#allocation6 + $0x70] sm:$0xff] %vm1271, %v1499
      %1516 = vst.msk [vmem:[#allocation6 + $0x78] sm:$0xff] %vm1271, %v1500
      %v1517 = vld [vmem:[#allocation7] sm:$0xff]
      %v1518 = vld [vmem:[#allocation7 + $0x8] sm:$0xff]
      %v1519 = vld [vmem:[#allocation7 + $0x10] sm:$0xff]
      %v1520 = vld [vmem:[#allocation7 + $0x18] sm:$0xff]
      %v1521 = vld [vmem:[#allocation7 + $0x20] sm:$0xff]
      %v1522 = vld [vmem:[#allocation7 + $0x28] sm:$0xff]
      %v1523 = vld [vmem:[#allocation7 + $0x30] sm:$0xff]
      %v1524 = vld [vmem:[#allocation7 + $0x38] sm:$0xff]
      %v1525 = vld [vmem:[#allocation7 + $0x40] sm:$0xff]
      %v1526 = vld [vmem:[#allocation7 + $0x48] sm:$0xff]
      %v1527 = vld [vmem:[#allocation7 + $0x50] sm:$0xff]
      %v1528 = vld [vmem:[#allocation7 + $0x58] sm:$0xff]
      %v1529 = vld [vmem:[#allocation7 + $0x60] sm:$0xff]
      %v1530 = vld [vmem:[#allocation7 + $0x68] sm:$0xff]
      %v1531 = vld [vmem:[#allocation7 + $0x70] sm:$0xff]
      %v1532 = vld [vmem:[#allocation7 + $0x78] sm:$0xff]
      %1533 = vadd.xlane.f32.xlu0 %v1405
      %v1534 = vpop.xlane.xlu0 %1533
      %1535 = vadd.xlane.f32.xlu0 %v1406
      %v1536 = vpop.xlane.xlu0 %1535
      %1537 = vadd.xlane.f32.xlu0 %v1407
      %v1538 = vpop.xlane.xlu0 %1537
      %1539 = vadd.xlane.f32.xlu0 %v1408
      %v1540 = vpop.xlane.xlu0 %1539
      %1541 = vadd.xlane.f32.xlu0 %v1409
      %v1542 = vpop.xlane.xlu0 %1541
      %1543 = vadd.xlane.f32.xlu0 %v1410
      %v1544 = vpop.xlane.xlu0 %1543
      %1545 = vadd.xlane.f32.xlu0 %v1411
      %v1546 = vpop.xlane.xlu0 %1545
      %1547 = vadd.xlane.f32.xlu0 %v1412
      %v1548 = vpop.xlane.xlu0 %1547
      %1549 = vadd.xlane.f32.xlu0 %v1413
      %v1550 = vpop.xlane.xlu0 %1549
      %1551 = vadd.xlane.f32.xlu0 %v1414
      %v1552 = vpop.xlane.xlu0 %1551
      %1553 = vadd.xlane.f32.xlu0 %v1415
      %v1554 = vpop.xlane.xlu0 %1553
      %1555 = vadd.xlane.f32.xlu0 %v1416
      %v1556 = vpop.xlane.xlu0 %1555
      %1557 = vadd.xlane.f32.xlu0 %v1417
      %v1558 = vpop.xlane.xlu0 %1557
      %1559 = vadd.xlane.f32.xlu0 %v1418
      %v1560 = vpop.xlane.xlu0 %1559
      %1561 = vadd.xlane.f32.xlu0 %v1419
      %v1562 = vpop.xlane.xlu0 %1561
      %1563 = vadd.xlane.f32.xlu0 %v1420
      %v1564 = vpop.xlane.xlu0 %1563
      %v1565 = vadd.f32 %v1517, %v1534
      %v1566 = vadd.f32 %v1518, %v1536
      %v1567 = vadd.f32 %v1519, %v1538
      %v1568 = vadd.f32 %v1520, %v1540
      %v1569 = vadd.f32 %v1521, %v1542
      %v1570 = vadd.f32 %v1522, %v1544
      %v1571 = vadd.f32 %v1523, %v1546
      %v1572 = vadd.f32 %v1524, %v1548
      %v1573 = vadd.f32 %v1525, %v1550
      %v1574 = vadd.f32 %v1526, %v1552
      %v1575 = vadd.f32 %v1527, %v1554
      %v1576 = vadd.f32 %v1528, %v1556
      %v1577 = vadd.f32 %v1529, %v1558
      %v1578 = vadd.f32 %v1530, %v1560
      %v1579 = vadd.f32 %v1531, %v1562
      %v1580 = vadd.f32 %v1532, %v1564
      %1581 = vst.msk [vmem:[#allocation7] sm:$0xff] %vm1271, %v1565
      %1582 = vst.msk [vmem:[#allocation7 + $0x8] sm:$0xff] %vm1271, %v1566
      %1583 = vst.msk [vmem:[#allocation7 + $0x10] sm:$0xff] %vm1271, %v1567
      %1584 = vst.msk [vmem:[#allocation7 + $0x18] sm:$0xff] %vm1271, %v1568
      %1585 = vst.msk [vmem:[#allocation7 + $0x20] sm:$0xff] %vm1271, %v1569
      %1586 = vst.msk [vmem:[#allocation7 + $0x28] sm:$0xff] %vm1271, %v1570
      %1587 = vst.msk [vmem:[#allocation7 + $0x30] sm:$0xff] %vm1271, %v1571
      %1588 = vst.msk [vmem:[#allocation7 + $0x38] sm:$0xff] %vm1271, %v1572
      %1589 = vst.msk [vmem:[#allocation7 + $0x40] sm:$0xff] %vm1271, %v1573
      %1590 = vst.msk [vmem:[#allocation7 + $0x48] sm:$0xff] %vm1271, %v1574
      %1591 = vst.msk [vmem:[#allocation7 + $0x50] sm:$0xff] %vm1271, %v1575
      %1592 = vst.msk [vmem:[#allocation7 + $0x58] sm:$0xff] %vm1271, %v1576
      %1593 = vst.msk [vmem:[#allocation7 + $0x60] sm:$0xff] %vm1271, %v1577
      %1594 = vst.msk [vmem:[#allocation7 + $0x68] sm:$0xff] %vm1271, %v1578
      %1595 = vst.msk [vmem:[#allocation7 + $0x70] sm:$0xff] %vm1271, %v1579
      %1596 = vst.msk [vmem:[#allocation7 + $0x78] sm:$0xff] %vm1271, %v1580
      %p1597 = scmp.eq.s32.totalorder %s20, 2
      // Predicated region
      $region41: #{tpu_custom_call.1} parent=35 // pred_check
        %p1598 = pneg %p1597
      $region42: #{tpu_custom_call.1} parent=35 // pred_check_branch
        %1600 = sbr.rel (%p1598) target = $region44
      $region43: #{tpu_custom_call.1} parent=35 // pred_region
        %v1601 = vld [vmem:[#allocation3] sm:$0xff]
        %v1602 = vld [vmem:[#allocation3 + $0x8] sm:$0xff]
        %v1603 = vld [vmem:[#allocation3 + $0x10] sm:$0xff]
        %v1604 = vld [vmem:[#allocation3 + $0x18] sm:$0xff]
        %v1605 = vld [vmem:[#allocation3 + $0x20] sm:$0xff]
        %v1606 = vld [vmem:[#allocation3 + $0x28] sm:$0xff]
        %v1607 = vld [vmem:[#allocation3 + $0x30] sm:$0xff]
        %v1608 = vld [vmem:[#allocation3 + $0x38] sm:$0xff]
        %v1609 = vld [vmem:[#allocation3 + $0x40] sm:$0xff]
        %v1610 = vld [vmem:[#allocation3 + $0x48] sm:$0xff]
        %v1611 = vld [vmem:[#allocation3 + $0x50] sm:$0xff]
        %v1612 = vld [vmem:[#allocation3 + $0x58] sm:$0xff]
        %v1613 = vld [vmem:[#allocation3 + $0x60] sm:$0xff]
        %v1614 = vld [vmem:[#allocation3 + $0x68] sm:$0xff]
        %v1615 = vld [vmem:[#allocation3 + $0x70] sm:$0xff]
        %v1616 = vld [vmem:[#allocation3 + $0x78] sm:$0xff]
        %v1617 = vld [vmem:[#allocation4] sm:$0xff]
        %v1618 = vld [vmem:[#allocation4 + $0x8] sm:$0xff]
        %v1619 = vld [vmem:[#allocation4 + $0x10] sm:$0xff]
        %v1620 = vld [vmem:[#allocation4 + $0x18] sm:$0xff]
        %v1621 = vld [vmem:[#allocation4 + $0x20] sm:$0xff]
        %v1622 = vld [vmem:[#allocation4 + $0x28] sm:$0xff]
        %v1623 = vld [vmem:[#allocation4 + $0x30] sm:$0xff]
        %v1624 = vld [vmem:[#allocation4 + $0x38] sm:$0xff]
        %v1625 = vld [vmem:[#allocation4 + $0x40] sm:$0xff]
        %v1626 = vld [vmem:[#allocation4 + $0x48] sm:$0xff]
        %v1627 = vld [vmem:[#allocation4 + $0x50] sm:$0xff]
        %v1628 = vld [vmem:[#allocation4 + $0x58] sm:$0xff]
        %v1629 = vld [vmem:[#allocation4 + $0x60] sm:$0xff]
        %v1630 = vld [vmem:[#allocation4 + $0x68] sm:$0xff]
        %v1631 = vld [vmem:[#allocation4 + $0x70] sm:$0xff]
        %v1632 = vld [vmem:[#allocation4 + $0x78] sm:$0xff]
        %v1633 = vld [vmem:[#allocation5] sm:$0xff]
        %v1634 = vld [vmem:[#allocation5 + $0x8] sm:$0xff]
        %v1635 = vld [vmem:[#allocation5 + $0x10] sm:$0xff]
        %v1636 = vld [vmem:[#allocation5 + $0x18] sm:$0xff]
        %v1637 = vld [vmem:[#allocation5 + $0x20] sm:$0xff]
        %v1638 = vld [vmem:[#allocation5 + $0x28] sm:$0xff]
        %v1639 = vld [vmem:[#allocation5 + $0x30] sm:$0xff]
        %v1640 = vld [vmem:[#allocation5 + $0x38] sm:$0xff]
        %v1641 = vld [vmem:[#allocation5 + $0x40] sm:$0xff]
        %v1642 = vld [vmem:[#allocation5 + $0x48] sm:$0xff]
        %v1643 = vld [vmem:[#allocation5 + $0x50] sm:$0xff]
        %v1644 = vld [vmem:[#allocation5 + $0x58] sm:$0xff]
        %v1645 = vld [vmem:[#allocation5 + $0x60] sm:$0xff]
        %v1646 = vld [vmem:[#allocation5 + $0x68] sm:$0xff]
        %v1647 = vld [vmem:[#allocation5 + $0x70] sm:$0xff]
        %v1648 = vld [vmem:[#allocation5 + $0x78] sm:$0xff]
        %v1649 = vsub.f32 %v1601, %v1617
        %v1650 = vsub.f32 %v1602, %v1618
        %v1651 = vsub.f32 %v1603, %v1619
        %v1652 = vsub.f32 %v1604, %v1620
        %v1653 = vsub.f32 %v1605, %v1621
        %v1654 = vsub.f32 %v1606, %v1622
        %v1655 = vsub.f32 %v1607, %v1623
        %v1656 = vsub.f32 %v1608, %v1624
        %v1657 = vsub.f32 %v1609, %v1625
        %v1658 = vsub.f32 %v1610, %v1626
        %v1659 = vsub.f32 %v1611, %v1627
        %v1660 = vsub.f32 %v1612, %v1628
        %v1661 = vsub.f32 %v1613, %v1629
        %v1662 = vsub.f32 %v1614, %v1630
        %v1663 = vsub.f32 %v1615, %v1631
        %v1664 = vsub.f32 %v1616, %v1632
        %v1665 = vmul.f32 %v1649, 1.442695
        %v1666 = vpow.pop %v1665
        %v1667 = vmul.f32 %v1650, 1.442695
        %v1668 = vpow.pop %v1667
        %v1669 = vmul.f32 %v1651, 1.442695
        %v1670 = vpow.pop %v1669
        %v1671 = vmul.f32 %v1652, 1.442695
        %v1672 = vpow.pop %v1671
        %v1673 = vmul.f32 %v1653, 1.442695
        %v1674 = vpow.pop %v1673
        %v1675 = vmul.f32 %v1654, 1.442695
        %v1676 = vpow.pop %v1675
        %v1677 = vmul.f32 %v1655, 1.442695
        %v1678 = vpow.pop %v1677
        %v1679 = vmul.f32 %v1656, 1.442695
        %v1680 = vpow.pop %v1679
        %v1681 = vmul.f32 %v1657, 1.442695
        %v1682 = vpow.pop %v1681
        %v1683 = vmul.f32 %v1658, 1.442695
        %v1684 = vpow.pop %v1683
        %v1685 = vmul.f32 %v1659, 1.442695
        %v1686 = vpow.pop %v1685
        %v1687 = vmul.f32 %v1660, 1.442695
        %v1688 = vpow.pop %v1687
        %v1689 = vmul.f32 %v1661, 1.442695
        %v1690 = vpow.pop %v1689
        %v1691 = vmul.f32 %v1662, 1.442695
        %v1692 = vpow.pop %v1691
        %v1693 = vmul.f32 %v1663, 1.442695
        %v1694 = vpow.pop %v1693
        %v1695 = vmul.f32 %v1664, 1.442695
        %v1696 = vpow.pop %v1695
        %v1697 = vsub.f32 %v1633, %v1666
        %v1698 = vsub.f32 %v1634, %v1668
        %v1699 = vsub.f32 %v1635, %v1670
        %v1700 = vsub.f32 %v1636, %v1672
        %v1701 = vsub.f32 %v1637, %v1674
        %v1702 = vsub.f32 %v1638, %v1676
        %v1703 = vsub.f32 %v1639, %v1678
        %v1704 = vsub.f32 %v1640, %v1680
        %v1705 = vsub.f32 %v1641, %v1682
        %v1706 = vsub.f32 %v1642, %v1684
        %v1707 = vsub.f32 %v1643, %v1686
        %v1708 = vsub.f32 %v1644, %v1688
        %v1709 = vsub.f32 %v1645, %v1690
        %v1710 = vsub.f32 %v1646, %v1692
        %v1711 = vsub.f32 %v1647, %v1694
        %v1712 = vsub.f32 %v1648, %v1696
        %v1713 = vmax.f32 %v1697, 1e-30
        %v1714 = vmax.f32 %v1698, 1e-30
        %v1715 = vmax.f32 %v1699, 1e-30
        %v1716 = vmax.f32 %v1700, 1e-30
        %v1717 = vmax.f32 %v1701, 1e-30
        %v1718 = vmax.f32 %v1702, 1e-30
        %v1719 = vmax.f32 %v1703, 1e-30
        %v1720 = vmax.f32 %v1704, 1e-30
        %v1721 = vmax.f32 %v1705, 1e-30
        %v1722 = vmax.f32 %v1706, 1e-30
        %v1723 = vmax.f32 %v1707, 1e-30
        %v1724 = vmax.f32 %v1708, 1e-30
        %v1725 = vmax.f32 %v1709, 1e-30
        %v1726 = vmax.f32 %v1710, 1e-30
        %v1727 = vmax.f32 %v1711, 1e-30
        %v1728 = vmax.f32 %v1712, 1e-30
        %v1729 = vlog2.pop %v1713
        %v1730 = vmul.f32 %v1729, 0.6931472
        %v1731 = vlog2.pop %v1714
        %v1732 = vmul.f32 %v1731, 0.6931472
        %v1733 = vlog2.pop %v1715
        %v1734 = vmul.f32 %v1733, 0.6931472
        %v1735 = vlog2.pop %v1716
        %v1736 = vmul.f32 %v1735, 0.6931472
        %v1737 = vlog2.pop %v1717
        %v1738 = vmul.f32 %v1737, 0.6931472
        %v1739 = vlog2.pop %v1718
        %v1740 = vmul.f32 %v1739, 0.6931472
        %v1741 = vlog2.pop %v1719
        %v1742 = vmul.f32 %v1741, 0.6931472
        %v1743 = vlog2.pop %v1720
        %v1744 = vmul.f32 %v1743, 0.6931472
        %v1745 = vlog2.pop %v1721
        %v1746 = vmul.f32 %v1745, 0.6931472
        %v1747 = vlog2.pop %v1722
        %v1748 = vmul.f32 %v1747, 0.6931472
        %v1749 = vlog2.pop %v1723
        %v1750 = vmul.f32 %v1749, 0.6931472
        %v1751 = vlog2.pop %v1724
        %v1752 = vmul.f32 %v1751, 0.6931472
        %v1753 = vlog2.pop %v1725
        %v1754 = vmul.f32 %v1753, 0.6931472
        %v1755 = vlog2.pop %v1726
        %v1756 = vmul.f32 %v1755, 0.6931472
        %v1757 = vlog2.pop %v1727
        %v1758 = vmul.f32 %v1757, 0.6931472
        %v1759 = vlog2.pop %v1728
        %v1760 = vmul.f32 %v1759, 0.6931472
        %v1761 = vadd.f32 %v1730, %v1617
        %v1762 = vadd.f32 %v1732, %v1618
        %v1763 = vadd.f32 %v1734, %v1619
        %v1764 = vadd.f32 %v1736, %v1620
        %v1765 = vadd.f32 %v1738, %v1621
        %v1766 = vadd.f32 %v1740, %v1622
        %v1767 = vadd.f32 %v1742, %v1623
        %v1768 = vadd.f32 %v1744, %v1624
        %v1769 = vadd.f32 %v1746, %v1625
        %v1770 = vadd.f32 %v1748, %v1626
        %v1771 = vadd.f32 %v1750, %v1627
        %v1772 = vadd.f32 %v1752, %v1628
        %v1773 = vadd.f32 %v1754, %v1629
        %v1774 = vadd.f32 %v1756, %v1630
        %v1775 = vadd.f32 %v1758, %v1631
        %v1776 = vadd.f32 %v1760, %v1632
        %v1777 = vld [vmem:[#allocation7] sm:$0xff]
        %v1778 = vld [vmem:[#allocation7 + $0x8] sm:$0xff]
        %v1779 = vld [vmem:[#allocation7 + $0x10] sm:$0xff]
        %v1780 = vld [vmem:[#allocation7 + $0x18] sm:$0xff]
        %v1781 = vld [vmem:[#allocation7 + $0x20] sm:$0xff]
        %v1782 = vld [vmem:[#allocation7 + $0x28] sm:$0xff]
        %v1783 = vld [vmem:[#allocation7 + $0x30] sm:$0xff]
        %v1784 = vld [vmem:[#allocation7 + $0x38] sm:$0xff]
        %v1785 = vld [vmem:[#allocation7 + $0x40] sm:$0xff]
        %v1786 = vld [vmem:[#allocation7 + $0x48] sm:$0xff]
        %v1787 = vld [vmem:[#allocation7 + $0x50] sm:$0xff]
        %v1788 = vld [vmem:[#allocation7 + $0x58] sm:$0xff]
        %v1789 = vld [vmem:[#allocation7 + $0x60] sm:$0xff]
        %v1790 = vld [vmem:[#allocation7 + $0x68] sm:$0xff]
        %v1791 = vld [vmem:[#allocation7 + $0x70] sm:$0xff]
        %v1792 = vld [vmem:[#allocation7 + $0x78] sm:$0xff]
        %v1793 = vsub.f32 %v1777, 1.0
        %v1794 = vsub.f32 %v1778, 1.0
        %v1795 = vsub.f32 %v1779, 1.0
        %v1796 = vsub.f32 %v1780, 1.0
        %v1797 = vsub.f32 %v1781, 1.0
        %v1798 = vsub.f32 %v1782, 1.0
        %v1799 = vsub.f32 %v1783, 1.0
        %v1800 = vsub.f32 %v1784, 1.0
        %v1801 = vsub.f32 %v1785, 1.0
        %v1802 = vsub.f32 %v1786, 1.0
        %v1803 = vsub.f32 %v1787, 1.0
        %v1804 = vsub.f32 %v1788, 1.0
        %v1805 = vsub.f32 %v1789, 1.0
        %v1806 = vsub.f32 %v1790, 1.0
        %v1807 = vsub.f32 %v1791, 1.0
        %v1808 = vsub.f32 %v1792, 1.0
        %v1809 = vld [vmem:[#allocation6] sm:$0xff]
        %v1810 = vld [vmem:[#allocation6 + $0x8] sm:$0xff]
        %v1811 = vld [vmem:[#allocation6 + $0x10] sm:$0xff]
        %v1812 = vld [vmem:[#allocation6 + $0x18] sm:$0xff]
        %v1813 = vld [vmem:[#allocation6 + $0x20] sm:$0xff]
        %v1814 = vld [vmem:[#allocation6 + $0x28] sm:$0xff]
        %v1815 = vld [vmem:[#allocation6 + $0x30] sm:$0xff]
        %v1816 = vld [vmem:[#allocation6 + $0x38] sm:$0xff]
        %v1817 = vld [vmem:[#allocation6 + $0x40] sm:$0xff]
        %v1818 = vld [vmem:[#allocation6 + $0x48] sm:$0xff]
        %v1819 = vld [vmem:[#allocation6 + $0x50] sm:$0xff]
        %v1820 = vld [vmem:[#allocation6 + $0x58] sm:$0xff]
        %v1821 = vld [vmem:[#allocation6 + $0x60] sm:$0xff]
        %v1822 = vld [vmem:[#allocation6 + $0x68] sm:$0xff]
        %v1823 = vld [vmem:[#allocation6 + $0x70] sm:$0xff]
        %v1824 = vld [vmem:[#allocation6 + $0x78] sm:$0xff]
        %v1825 = vsub.f32 %v1809, %v1601
        %v1826 = vsub.f32 %v1810, %v1602
        %v1827 = vsub.f32 %v1811, %v1603
        %v1828 = vsub.f32 %v1812, %v1604
        %v1829 = vsub.f32 %v1813, %v1605
        %v1830 = vsub.f32 %v1814, %v1606
        %v1831 = vsub.f32 %v1815, %v1607
        %v1832 = vsub.f32 %v1816, %v1608
        %v1833 = vsub.f32 %v1817, %v1609
        %v1834 = vsub.f32 %v1818, %v1610
        %v1835 = vsub.f32 %v1819, %v1611
        %v1836 = vsub.f32 %v1820, %v1612
        %v1837 = vsub.f32 %v1821, %v1613
        %v1838 = vsub.f32 %v1822, %v1614
        %v1839 = vsub.f32 %v1823, %v1615
        %v1840 = vsub.f32 %v1824, %v1616
        %v1841 = vmul.f32 %v1793, %v1761
        %v1842 = vmul.f32 %v1794, %v1762
        %v1843 = vmul.f32 %v1795, %v1763
        %v1844 = vmul.f32 %v1796, %v1764
        %v1845 = vmul.f32 %v1797, %v1765
        %v1846 = vmul.f32 %v1798, %v1766
        %v1847 = vmul.f32 %v1799, %v1767
        %v1848 = vmul.f32 %v1800, %v1768
        %v1849 = vmul.f32 %v1801, %v1769
        %v1850 = vmul.f32 %v1802, %v1770
        %v1851 = vmul.f32 %v1803, %v1771
        %v1852 = vmul.f32 %v1804, %v1772
        %v1853 = vmul.f32 %v1805, %v1773
        %v1854 = vmul.f32 %v1806, %v1774
        %v1855 = vmul.f32 %v1807, %v1775
        %v1856 = vmul.f32 %v1808, %v1776
        %v1857 = vsub.f32 %v1825, %v1841
        %v1858 = vsub.f32 %v1826, %v1842
        %v1859 = vsub.f32 %v1827, %v1843
        %v1860 = vsub.f32 %v1828, %v1844
        %v1861 = vsub.f32 %v1829, %v1845
        %v1862 = vsub.f32 %v1830, %v1846
        %v1863 = vsub.f32 %v1831, %v1847
        %v1864 = vsub.f32 %v1832, %v1848
        %v1865 = vsub.f32 %v1833, %v1849
        %v1866 = vsub.f32 %v1834, %v1850
        %v1867 = vsub.f32 %v1835, %v1851
        %v1868 = vsub.f32 %v1836, %v1852
        %v1869 = vsub.f32 %v1837, %v1853
        %v1870 = vsub.f32 %v1838, %v1854
        %v1871 = vsub.f32 %v1839, %v1855
        %v1872 = vsub.f32 %v1840, %v1856
        %v1873 = vsub.f32 0.0, %v1857
        %v1874 = vsub.f32 0.0, %v1858
        %v1875 = vsub.f32 0.0, %v1859
        %v1876 = vsub.f32 0.0, %v1860
        %v1877 = vsub.f32 0.0, %v1861
        %v1878 = vsub.f32 0.0, %v1862
        %v1879 = vsub.f32 0.0, %v1863
        %v1880 = vsub.f32 0.0, %v1864
        %v1881 = vsub.f32 0.0, %v1865
        %v1882 = vsub.f32 0.0, %v1866
        %v1883 = vsub.f32 0.0, %v1867
        %v1884 = vsub.f32 0.0, %v1868
        %v1885 = vsub.f32 0.0, %v1869
        %v1886 = vsub.f32 0.0, %v1870
        %v1887 = vsub.f32 0.0, %v1871
        %v1888 = vsub.f32 0.0, %v1872
        %v1889 = vadd.f32 %v1793, 1e-05
        %v1890 = vadd.f32 %v1794, 1e-05
        %v1891 = vadd.f32 %v1795, 1e-05
        %v1892 = vadd.f32 %v1796, 1e-05
        %v1893 = vadd.f32 %v1797, 1e-05
        %v1894 = vadd.f32 %v1798, 1e-05
        %v1895 = vadd.f32 %v1799, 1e-05
        %v1896 = vadd.f32 %v1800, 1e-05
        %v1897 = vadd.f32 %v1801, 1e-05
        %v1898 = vadd.f32 %v1802, 1e-05
        %v1899 = vadd.f32 %v1803, 1e-05
        %v1900 = vadd.f32 %v1804, 1e-05
        %v1901 = vadd.f32 %v1805, 1e-05
        %v1902 = vadd.f32 %v1806, 1e-05
        %v1903 = vadd.f32 %v1807, 1e-05
        %v1904 = vadd.f32 %v1808, 1e-05
        %v1905 = vrcp.pop %v1889
        %v1906 = vmul.f32 %v1873, %v1905
        %v1907 = vrcp.pop %v1890
        %v1908 = vmul.f32 %v1874, %v1907
        %v1909 = vrcp.pop %v1891
        %v1910 = vmul.f32 %v1875, %v1909
        %v1911 = vrcp.pop %v1892
        %v1912 = vmul.f32 %v1876, %v1911
        %v1913 = vrcp.pop %v1893
        %v1914 = vmul.f32 %v1877, %v1913
        %v1915 = vrcp.pop %v1894
        %v1916 = vmul.f32 %v1878, %v1915
        %v1917 = vrcp.pop %v1895
        %v1918 = vmul.f32 %v1879, %v1917
        %v1919 = vrcp.pop %v1896
        %v1920 = vmul.f32 %v1880, %v1919
        %v1921 = vrcp.pop %v1897
        %v1922 = vmul.f32 %v1881, %v1921
        %v1923 = vrcp.pop %v1898
        %v1924 = vmul.f32 %v1882, %v1923
        %v1925 = vrcp.pop %v1899
        %v1926 = vmul.f32 %v1883, %v1925
        %v1927 = vrcp.pop %v1900
        %v1928 = vmul.f32 %v1884, %v1927
        %v1929 = vrcp.pop %v1901
        %v1930 = vmul.f32 %v1885, %v1929
        %v1931 = vrcp.pop %v1902
        %v1932 = vmul.f32 %v1886, %v1931
        %v1933 = vrcp.pop %v1903
        %v1934 = vmul.f32 %v1887, %v1933
        %v1935 = vrcp.pop %v1904
        %v1936 = vmul.f32 %v1888, %v1935
        %vm1937 = vcmp.gt.f32.partialorder %v1793, 0.5
        %vm1938 = vcmp.gt.f32.partialorder %v1794, 0.5
        %vm1939 = vcmp.gt.f32.partialorder %v1795, 0.5
        %vm1940 = vcmp.gt.f32.partialorder %v1796, 0.5
        %vm1941 = vcmp.gt.f32.partialorder %v1797, 0.5
        %vm1942 = vcmp.gt.f32.partialorder %v1798, 0.5
        %vm1943 = vcmp.gt.f32.partialorder %v1799, 0.5
        %vm1944 = vcmp.gt.f32.partialorder %v1800, 0.5
        %vm1945 = vcmp.gt.f32.partialorder %v1801, 0.5
        %vm1946 = vcmp.gt.f32.partialorder %v1802, 0.5
        %vm1947 = vcmp.gt.f32.partialorder %v1803, 0.5
        %vm1948 = vcmp.gt.f32.partialorder %v1804, 0.5
        %vm1949 = vcmp.gt.f32.partialorder %v1805, 0.5
        %vm1950 = vcmp.gt.f32.partialorder %v1806, 0.5
        %vm1951 = vcmp.gt.f32.partialorder %v1807, 0.5
        %vm1952 = vcmp.gt.f32.partialorder %v1808, 0.5
        %v1953 = vsel %vm1937, %v1906, 0.0
        %v1954 = vsel %vm1938, %v1908, 0.0
        %v1955 = vsel %vm1939, %v1910, 0.0
        %v1956 = vsel %vm1940, %v1912, 0.0
        %v1957 = vsel %vm1941, %v1914, 0.0
        %v1958 = vsel %vm1942, %v1916, 0.0
        %v1959 = vsel %vm1943, %v1918, 0.0
        %v1960 = vsel %vm1944, %v1920, 0.0
        %v1961 = vsel %vm1945, %v1922, 0.0
        %v1962 = vsel %vm1946, %v1924, 0.0
        %v1963 = vsel %vm1947, %v1926, 0.0
        %v1964 = vsel %vm1948, %v1928, 0.0
        %v1965 = vsel %vm1949, %v1930, 0.0
        %v1966 = vsel %vm1950, %v1932, 0.0
        %v1967 = vsel %vm1951, %v1934, 0.0
        %v1968 = vsel %vm1952, %v1936, 0.0
        %1969 = vst.msk [vmem:[%s269] sm:$0xff] %vm1271, %v1953
        %1970 = vst.msk [vmem:[%s269 + $0x8] sm:$0xff] %vm1271, %v1954
        %1971 = vst.msk [vmem:[%s269 + $0x10] sm:$0xff] %vm1271, %v1955
        %1972 = vst.msk [vmem:[%s269 + $0x18] sm:$0xff] %vm1271, %v1956
        %1973 = vst.msk [vmem:[%s269 + $0x20] sm:$0xff] %vm1271, %v1957
        %1974 = vst.msk [vmem:[%s269 + $0x28] sm:$0xff] %vm1271, %v1958
        %1975 = vst.msk [vmem:[%s269 + $0x30] sm:$0xff] %vm1271, %v1959
        %1976 = vst.msk [vmem:[%s269 + $0x38] sm:$0xff] %vm1271, %v1960
        %1977 = vst.msk [vmem:[%s269 + $0x40] sm:$0xff] %vm1271, %v1961
        %1978 = vst.msk [vmem:[%s269 + $0x48] sm:$0xff] %vm1271, %v1962
        %1979 = vst.msk [vmem:[%s269 + $0x50] sm:$0xff] %vm1271, %v1963
        %1980 = vst.msk [vmem:[%s269 + $0x58] sm:$0xff] %vm1271, %v1964
        %1981 = vst.msk [vmem:[%s269 + $0x60] sm:$0xff] %vm1271, %v1965
        %1982 = vst.msk [vmem:[%s269 + $0x68] sm:$0xff] %vm1271, %v1966
        %1983 = vst.msk [vmem:[%s269 + $0x70] sm:$0xff] %vm1271, %v1967
        %1984 = vst.msk [vmem:[%s269 + $0x78] sm:$0xff] %vm1271, %v1968
      $region44: #{tpu_custom_call.1} parent=35 // pred_fallthru
        _
      %s1985 = smul.u32 16, %s19
      %p1986 = scmp.lt.s32.totalorder %s1985, 47
      %s1987 = scalar_select %p1986, %s1985, 47
      %s1988 = smul.addr %s1987, 8
      %s1989 = scalar_lea.vmem %s4, %s1988
      // Predicated region
      $region45: #{tpu_custom_call.1} parent=35 // pred_check
        %p1990 = pneg %p149
      $region46: #{tpu_custom_call.1} parent=35 // pred_check_branch
        %1992 = sbr.rel (%p1990) target = $region48
      $region47: #{tpu_custom_call.1} parent=35 // pred_region
        %s1993 = smul.u32 16, %s19
      $region48: #{tpu_custom_call.1} parent=35 // pred_fallthru
        _
    $region36: #{tpu_custom_call.1} parent=5 // pred_fallthru
      _
    %p1994 = scmp.le.s32.totalorder 2, %s10
    // Predicated region
    $region49: #{tpu_custom_call.1} parent=5 // pred_check
      %p1995 = pneg %p1994
    $region50: #{tpu_custom_call.1} parent=5 // pred_check_branch
      %1997 = sbr.rel (%p1995) target = $region52
    $region51: #{tpu_custom_call.1} parent=5 // pred_region
      %s1998 = ssub.s32 %s10, 2
      // Predicated region
      $region53: #{tpu_custom_call.1} parent=51 // pred_check
        %p1999 = pneg %p155
      $region54: #{tpu_custom_call.1} parent=51 // pred_check_branch
        %2001 = sbr.rel (%p1999) target = $region56
      $region55: #{tpu_custom_call.1} parent=51 // pred_region
        %s2002 = smul.u32 16, %s21
        %p2003 = scmp.lt.s32.totalorder %s2002, 47
        %s2004 = scalar_select %p2003, %s2002, 47
        %s2005 = smul.addr %s2004, 8
        %s2006 = scalar_lea.vmem %s4, %s2005
      $region56: #{tpu_custom_call.1} parent=51 // pred_fallthru
        _
    $region52: #{tpu_custom_call.1} parent=5 // pred_fallthru
      _
  $region6: #{tpu_custom_call.1} parent=0 // loop_footer
    %s14 = sadd.s32 1, %s10
  $region7: #{tpu_custom_call.1} parent=0 // loop_footer_branch
    %9 = sbr.rel target = $region3
  $region8: #{tpu_custom_call.1} parent=0 // loop_exit
    _

</llo_original>
